<compile_context>
chip_gen: v7x
topology: tpu7x:2x2x1
jax: 0.10.0
libtpu: 0.0.40
codegen_flags: <defaults>
</compile_context>

<pallas_src>
import jax
import jax.numpy as jnp
from jax import lax
from jax.experimental import pallas as pl
from jax.experimental.pallas import tpu as pltpu

IN_FEATURES = 3 * 64 * 64   # 12288
K_CHUNK = 1024              # lanes reduced per inner step (multiple of 128)
assert IN_FEATURES % K_CHUNK == 0


def _round_up(n, m):
    return ((n + m - 1) // m) * m


def _vmem_capacity_bytes():
    """Trace-time VMEM capacity query; conservative (v7x 64 MiB/TC) fallback."""
    try:
        cap = getattr(pltpu.get_tpu_info(), "vmem_capacity_bytes", None)
        if cap:
            return int(cap)
    except Exception:
        pass
    return 64 * 1024 * 1024


def _low_disc_kernel(x_ref, w_ref, b_ref, o_ref):
    # x_ref: (b_tile, K) f32 VMEM   activations
    # w_ref: (1, K)      f32 VMEM   lane-dense weight row
    # b_ref: (1, 1)      f32 SMEM   scalar bias
    # o_ref: (b_tile, 1) f32 VMEM
    b_tile = x_ref.shape[0]
    n_chunks = IN_FEATURES // K_CHUNK

    def body(c, acc):
        start = pl.multiple_of(c * K_CHUNK, K_CHUNK)
        xk = x_ref[:, pl.ds(start, K_CHUNK)]            # (b_tile, K_CHUNK)
        wk = w_ref[:, pl.ds(start, K_CHUNK)]            # (1, K_CHUNK), bcast over rows
        # VPU multiply + XLU lane reduce; only (b_tile, 1) partial stays live.
        return acc + jnp.sum(xk * wk, axis=-1, keepdims=True)

    z = lax.fori_loop(0, n_chunks, body,
                      jnp.zeros((b_tile, 1), jnp.float32), unroll=True)
    z = z + b_ref[0, 0]
    e = jnp.exp(-z)                                                   # EUP
    o_ref[...] = pl.reciprocal(1.0 + e, approx=True).astype(o_ref.dtype)  # EUP


def low_discriminator_forward(x_nchw, weight, bias):
    """Pallas equivalent of lowDiscriminator.forward.

    x_nchw : (B, 3, 64, 64) float32
    weight : (1, 12288)     float32  (torch nn.Linear.weight convention)
    bias   : (1,)           float32
    returns (B, 1) float32
    """
    B = x_nchw.shape[0]
    x = x_nchw.reshape(B, IN_FEATURES)                  # == torch .view(-1, 3*64*64)
    w = weight.reshape(1, IN_FEATURES).astype(jnp.float32)
    b = bias.reshape(1, 1).astype(jnp.float32)          # scalar -> SMEM

    # Per-generation block cap (do not port the 512-row config to 64 MiB-VMEM chips).
    if _vmem_capacity_bytes() >= 96 * 1024 * 1024:
        b_tile_max, vmem_limit = 512, 56 * 1024 * 1024   # v5e / v6e (128 MiB VMEM)
    else:
        b_tile_max, vmem_limit = 256, 40 * 1024 * 1024   # v7x (64 MiB VMEM per TC)

    # Minimize wasted (ragged) rows; force >= 2 grid steps when the batch is big
    # enough so the "parallel" batch axis shards across both TCs on v7x.
    n_steps = pl.cdiv(B, b_tile_max)
    if n_steps < 2 and B >= 16:
        n_steps = 2
    b_tile = min(_round_up(pl.cdiv(B, n_steps), 8), b_tile_max)
    grid = (pl.cdiv(B, b_tile),)     # ragged last block: no host-side jnp.pad copy

    out = pl.pallas_call(
        _low_disc_kernel,
        out_shape=jax.ShapeDtypeStruct((B, 1), jnp.float32),
        grid_spec=pltpu.PrefetchScalarGridSpec(
            num_scalar_prefetch=0,
            grid=grid,
            in_specs=[
                pl.BlockSpec((b_tile, IN_FEATURES), lambda i: (i, 0)),   # activations
                pl.BlockSpec((1, IN_FEATURES), lambda i: (0, 0)),        # weight row
                pl.BlockSpec(memory_space=pltpu.MemorySpace.SMEM),       # bias scalar
            ],
            out_specs=pl.BlockSpec((b_tile, 1), lambda i: (i, 0)),
        ),
        compiler_params=pltpu.CompilerParams(
            dimension_semantics=("parallel",),       # batch axis -> both TCs on v7x
            vmem_limit_bytes=vmem_limit,
        ),
    )(x, w, b)
    return out


if __name__ == "__main__":
    key = jax.random.PRNGKey(0)
    k_x, k_w, k_b, k_x2 = jax.random.split(key, 4)

    # Deterministic nn.Linear-style init: U(-1/sqrt(fan_in), 1/sqrt(fan_in)).
    bound = 1.0 / (IN_FEATURES ** 0.5)
    weight = jax.random.uniform(
        k_w, (1, IN_FEATURES), minval=-bound, maxval=bound, dtype=jnp.float32
    )
    bias = jax.random.uniform(
        k_b, (1,), minval=-bound, maxval=bound, dtype=jnp.float32
    )

    def ref_forward(x):
        return jax.nn.sigmoid(x.reshape(x.shape[0], -1) @ weight.T + bias)

    # Small batch: single (ragged) block.
    B = 2
    x = jax.random.normal(k_x, (B, 3, 64, 64), dtype=jnp.float32)
    out = jax.block_until_ready(low_discriminator_forward(x, weight, bias))
    assert out.shape == (B, 1)
    # Tolerance covers approx-reciprocal sigmoid + chunked-reduction order.
    assert jnp.allclose(out, ref_forward(x), atol=1e-3, rtol=1e-3), "B=2 mismatch"

    # Multi-step grid with a ragged last block (exercises the no-pad path).
    B2 = 20
    x2 = jax.random.normal(k_x2, (B2, 3, 64, 64), dtype=jnp.float32)
    out2 = jax.block_until_ready(low_discriminator_forward(x2, weight, bias))
    assert out2.shape == (B2, 1)
    assert jnp.allclose(out2, ref_forward(x2), atol=1e-3, rtol=1e-3), "B=20 mismatch"

    print("KERNEL_OK")
</pallas_src>

<mosaic_0001>
module attributes {stable_mosaic.version = 11 : i64} {
  func.func @_low_disc_kernel(%arg0: i32, %arg1: memref<8x12288xf32, #tpu.memory_space<vmem>>, %arg2: memref<1x12288xf32, #tpu.memory_space<vmem>>, %arg3: memref<1x1xf32, #tpu.memory_space<smem>>, %arg4: memref<8x1xf32, #tpu.memory_space<vmem>>) attributes {dimension_semantics = [#tpu.dimension_semantics<parallel>], iteration_bounds = array<i64: 1>, scalar_prefetch = 0 : i64, scratch_operands = 0 : i64, tpu.core_type = #tpu.core_type<tc>, window_params = [{transform_indices = @transform_0, window_bounds = array<i64: 8, 12288>}, {pipeline_mode = #tpu.pipeline_mode<synchronous>, transform_indices = @transform_1, window_bounds = array<i64: 1, 12288>}, {transform_indices = @transform_2, window_bounds = array<i64: 1, 1>}, {transform_indices = @transform_3, window_bounds = array<i64: 8, 1>}]} {
    %cst = arith.constant 0.000000e+00 : f32
    %0 = vector.broadcast %cst : f32 to vector<8x1xf32>
    %c0_i32 = arith.constant 0 : i32
    %c1024_i32 = arith.constant 1024 : i32
    %1 = arith.muli %c0_i32, %c1024_i32 : i32
    %2 = tpu.assume_multiple %1, 1024 : i32
    %c0 = arith.constant 0 : index
    %3 = arith.index_cast %2 : i32 to index
    %4 = vector.load %arg1[%c0, %3] : memref<8x12288xf32, #tpu.memory_space<vmem>>, vector<8x1024xf32>
    %c0_0 = arith.constant 0 : index
    %5 = arith.index_cast %2 : i32 to index
    %6 = vector.load %arg2[%c0_0, %5] : memref<1x12288xf32, #tpu.memory_space<vmem>>, vector<1x1024xf32>
    %7 = vector.broadcast %6 : vector<1x1024xf32> to vector<8x1024xf32>
    %8 = arith.mulf %4, %7 : vector<8x1024xf32>
    %cst_1 = arith.constant dense<0.000000e+00> : vector<8xf32>
    %9 = vector.multi_reduction <add>, %8, %cst_1 [1] : vector<8x1024xf32> to vector<8xf32>
    %10 = vector.shape_cast %9 : vector<8xf32> to vector<8x1xf32>
    %11 = arith.addf %0, %10 : vector<8x1xf32>
    %c1_i32 = arith.constant 1 : i32
    %c1024_i32_2 = arith.constant 1024 : i32
    %12 = arith.muli %c1_i32, %c1024_i32_2 : i32
    %13 = tpu.assume_multiple %12, 1024 : i32
    %c0_3 = arith.constant 0 : index
    %14 = arith.index_cast %13 : i32 to index
    %15 = vector.load %arg1[%c0_3, %14] : memref<8x12288xf32, #tpu.memory_space<vmem>>, vector<8x1024xf32>
    %c0_4 = arith.constant 0 : index
    %16 = arith.index_cast %13 : i32 to index
    %17 = vector.load %arg2[%c0_4, %16] : memref<1x12288xf32, #tpu.memory_space<vmem>>, vector<1x1024xf32>
    %18 = vector.broadcast %17 : vector<1x1024xf32> to vector<8x1024xf32>
    %19 = arith.mulf %15, %18 : vector<8x1024xf32>
    %cst_5 = arith.constant dense<0.000000e+00> : vector<8xf32>
    %20 = vector.multi_reduction <add>, %19, %cst_5 [1] : vector<8x1024xf32> to vector<8xf32>
    %21 = vector.shape_cast %20 : vector<8xf32> to vector<8x1xf32>
    %22 = arith.addf %11, %21 : vector<8x1xf32>
    %c2_i32 = arith.constant 2 : i32
    %c1024_i32_6 = arith.constant 1024 : i32
    %23 = arith.muli %c2_i32, %c1024_i32_6 : i32
    %24 = tpu.assume_multiple %23, 1024 : i32
    %c0_7 = arith.constant 0 : index
    %25 = arith.index_cast %24 : i32 to index
    %26 = vector.load %arg1[%c0_7, %25] : memref<8x12288xf32, #tpu.memory_space<vmem>>, vector<8x1024xf32>
    %c0_8 = arith.constant 0 : index
    %27 = arith.index_cast %24 : i32 to index
    %28 = vector.load %arg2[%c0_8, %27] : memref<1x12288xf32, #tpu.memory_space<vmem>>, vector<1x1024xf32>
    %29 = vector.broadcast %28 : vector<1x1024xf32> to vector<8x1024xf32>
    %30 = arith.mulf %26, %29 : vector<8x1024xf32>
    %cst_9 = arith.constant dense<0.000000e+00> : vector<8xf32>
    %31 = vector.multi_reduction <add>, %30, %cst_9 [1] : vector<8x1024xf32> to vector<8xf32>
    %32 = vector.shape_cast %31 : vector<8xf32> to vector<8x1xf32>
    %33 = arith.addf %22, %32 : vector<8x1xf32>
    %c3_i32 = arith.constant 3 : i32
    %c1024_i32_10 = arith.constant 1024 : i32
    %34 = arith.muli %c3_i32, %c1024_i32_10 : i32
    %35 = tpu.assume_multiple %34, 1024 : i32
    %c0_11 = arith.constant 0 : index
    %36 = arith.index_cast %35 : i32 to index
    %37 = vector.load %arg1[%c0_11, %36] : memref<8x12288xf32, #tpu.memory_space<vmem>>, vector<8x1024xf32>
    %c0_12 = arith.constant 0 : index
    %38 = arith.index_cast %35 : i32 to index
    %39 = vector.load %arg2[%c0_12, %38] : memref<1x12288xf32, #tpu.memory_space<vmem>>, vector<1x1024xf32>
    %40 = vector.broadcast %39 : vector<1x1024xf32> to vector<8x1024xf32>
    %41 = arith.mulf %37, %40 : vector<8x1024xf32>
    %cst_13 = arith.constant dense<0.000000e+00> : vector<8xf32>
    %42 = vector.multi_reduction <add>, %41, %cst_13 [1] : vector<8x1024xf32> to vector<8xf32>
    %43 = vector.shape_cast %42 : vector<8xf32> to vector<8x1xf32>
    %44 = arith.addf %33, %43 : vector<8x1xf32>
    %c4_i32 = arith.constant 4 : i32
    %c1024_i32_14 = arith.constant 1024 : i32
    %45 = arith.muli %c4_i32, %c1024_i32_14 : i32
    %46 = tpu.assume_multiple %45, 1024 : i32
    %c0_15 = arith.constant 0 : index
    %47 = arith.index_cast %46 : i32 to index
    %48 = vector.load %arg1[%c0_15, %47] : memref<8x12288xf32, #tpu.memory_space<vmem>>, vector<8x1024xf32>
    %c0_16 = arith.constant 0 : index
    %49 = arith.index_cast %46 : i32 to index
    %50 = vector.load %arg2[%c0_16, %49] : memref<1x12288xf32, #tpu.memory_space<vmem>>, vector<1x1024xf32>
    %51 = vector.broadcast %50 : vector<1x1024xf32> to vector<8x1024xf32>
    %52 = arith.mulf %48, %51 : vector<8x1024xf32>
    %cst_17 = arith.constant dense<0.000000e+00> : vector<8xf32>
    %53 = vector.multi_reduction <add>, %52, %cst_17 [1] : vector<8x1024xf32> to vector<8xf32>
    %54 = vector.shape_cast %53 : vector<8xf32> to vector<8x1xf32>
    %55 = arith.addf %44, %54 : vector<8x1xf32>
    %c5_i32 = arith.constant 5 : i32
    %c1024_i32_18 = arith.constant 1024 : i32
    %56 = arith.muli %c5_i32, %c1024_i32_18 : i32
    %57 = tpu.assume_multiple %56, 1024 : i32
    %c0_19 = arith.constant 0 : index
    %58 = arith.index_cast %57 : i32 to index
    %59 = vector.load %arg1[%c0_19, %58] : memref<8x12288xf32, #tpu.memory_space<vmem>>, vector<8x1024xf32>
    %c0_20 = arith.constant 0 : index
    %60 = arith.index_cast %57 : i32 to index
    %61 = vector.load %arg2[%c0_20, %60] : memref<1x12288xf32, #tpu.memory_space<vmem>>, vector<1x1024xf32>
    %62 = vector.broadcast %61 : vector<1x1024xf32> to vector<8x1024xf32>
    %63 = arith.mulf %59, %62 : vector<8x1024xf32>
    %cst_21 = arith.constant dense<0.000000e+00> : vector<8xf32>
    %64 = vector.multi_reduction <add>, %63, %cst_21 [1] : vector<8x1024xf32> to vector<8xf32>
    %65 = vector.shape_cast %64 : vector<8xf32> to vector<8x1xf32>
    %66 = arith.addf %55, %65 : vector<8x1xf32>
    %c6_i32 = arith.constant 6 : i32
    %c1024_i32_22 = arith.constant 1024 : i32
    %67 = arith.muli %c6_i32, %c1024_i32_22 : i32
    %68 = tpu.assume_multiple %67, 1024 : i32
    %c0_23 = arith.constant 0 : index
    %69 = arith.index_cast %68 : i32 to index
    %70 = vector.load %arg1[%c0_23, %69] : memref<8x12288xf32, #tpu.memory_space<vmem>>, vector<8x1024xf32>
    %c0_24 = arith.constant 0 : index
    %71 = arith.index_cast %68 : i32 to index
    %72 = vector.load %arg2[%c0_24, %71] : memref<1x12288xf32, #tpu.memory_space<vmem>>, vector<1x1024xf32>
    %73 = vector.broadcast %72 : vector<1x1024xf32> to vector<8x1024xf32>
    %74 = arith.mulf %70, %73 : vector<8x1024xf32>
    %cst_25 = arith.constant dense<0.000000e+00> : vector<8xf32>
    %75 = vector.multi_reduction <add>, %74, %cst_25 [1] : vector<8x1024xf32> to vector<8xf32>
    %76 = vector.shape_cast %75 : vector<8xf32> to vector<8x1xf32>
    %77 = arith.addf %66, %76 : vector<8x1xf32>
    %c7_i32 = arith.constant 7 : i32
    %c1024_i32_26 = arith.constant 1024 : i32
    %78 = arith.muli %c7_i32, %c1024_i32_26 : i32
    %79 = tpu.assume_multiple %78, 1024 : i32
    %c0_27 = arith.constant 0 : index
    %80 = arith.index_cast %79 : i32 to index
    %81 = vector.load %arg1[%c0_27, %80] : memref<8x12288xf32, #tpu.memory_space<vmem>>, vector<8x1024xf32>
    %c0_28 = arith.constant 0 : index
    %82 = arith.index_cast %79 : i32 to index
    %83 = vector.load %arg2[%c0_28, %82] : memref<1x12288xf32, #tpu.memory_space<vmem>>, vector<1x1024xf32>
    %84 = vector.broadcast %83 : vector<1x1024xf32> to vector<8x1024xf32>
    %85 = arith.mulf %81, %84 : vector<8x1024xf32>
    %cst_29 = arith.constant dense<0.000000e+00> : vector<8xf32>
    %86 = vector.multi_reduction <add>, %85, %cst_29 [1] : vector<8x1024xf32> to vector<8xf32>
    %87 = vector.shape_cast %86 : vector<8xf32> to vector<8x1xf32>
    %88 = arith.addf %77, %87 : vector<8x1xf32>
    %c8_i32 = arith.constant 8 : i32
    %c1024_i32_30 = arith.constant 1024 : i32
    %89 = arith.muli %c8_i32, %c1024_i32_30 : i32
    %90 = tpu.assume_multiple %89, 1024 : i32
    %c0_31 = arith.constant 0 : index
    %91 = arith.index_cast %90 : i32 to index
    %92 = vector.load %arg1[%c0_31, %91] : memref<8x12288xf32, #tpu.memory_space<vmem>>, vector<8x1024xf32>
    %c0_32 = arith.constant 0 : index
    %93 = arith.index_cast %90 : i32 to index
    %94 = vector.load %arg2[%c0_32, %93] : memref<1x12288xf32, #tpu.memory_space<vmem>>, vector<1x1024xf32>
    %95 = vector.broadcast %94 : vector<1x1024xf32> to vector<8x1024xf32>
    %96 = arith.mulf %92, %95 : vector<8x1024xf32>
    %cst_33 = arith.constant dense<0.000000e+00> : vector<8xf32>
    %97 = vector.multi_reduction <add>, %96, %cst_33 [1] : vector<8x1024xf32> to vector<8xf32>
    %98 = vector.shape_cast %97 : vector<8xf32> to vector<8x1xf32>
    %99 = arith.addf %88, %98 : vector<8x1xf32>
    %c9_i32 = arith.constant 9 : i32
    %c1024_i32_34 = arith.constant 1024 : i32
    %100 = arith.muli %c9_i32, %c1024_i32_34 : i32
    %101 = tpu.assume_multiple %100, 1024 : i32
    %c0_35 = arith.constant 0 : index
    %102 = arith.index_cast %101 : i32 to index
    %103 = vector.load %arg1[%c0_35, %102] : memref<8x12288xf32, #tpu.memory_space<vmem>>, vector<8x1024xf32>
    %c0_36 = arith.constant 0 : index
    %104 = arith.index_cast %101 : i32 to index
    %105 = vector.load %arg2[%c0_36, %104] : memref<1x12288xf32, #tpu.memory_space<vmem>>, vector<1x1024xf32>
    %106 = vector.broadcast %105 : vector<1x1024xf32> to vector<8x1024xf32>
    %107 = arith.mulf %103, %106 : vector<8x1024xf32>
    %cst_37 = arith.constant dense<0.000000e+00> : vector<8xf32>
    %108 = vector.multi_reduction <add>, %107, %cst_37 [1] : vector<8x1024xf32> to vector<8xf32>
    %109 = vector.shape_cast %108 : vector<8xf32> to vector<8x1xf32>
    %110 = arith.addf %99, %109 : vector<8x1xf32>
    %c10_i32 = arith.constant 10 : i32
    %c1024_i32_38 = arith.constant 1024 : i32
    %111 = arith.muli %c10_i32, %c1024_i32_38 : i32
    %112 = tpu.assume_multiple %111, 1024 : i32
    %c0_39 = arith.constant 0 : index
    %113 = arith.index_cast %112 : i32 to index
    %114 = vector.load %arg1[%c0_39, %113] : memref<8x12288xf32, #tpu.memory_space<vmem>>, vector<8x1024xf32>
    %c0_40 = arith.constant 0 : index
    %115 = arith.index_cast %112 : i32 to index
    %116 = vector.load %arg2[%c0_40, %115] : memref<1x12288xf32, #tpu.memory_space<vmem>>, vector<1x1024xf32>
    %117 = vector.broadcast %116 : vector<1x1024xf32> to vector<8x1024xf32>
    %118 = arith.mulf %114, %117 : vector<8x1024xf32>
    %cst_41 = arith.constant dense<0.000000e+00> : vector<8xf32>
    %119 = vector.multi_reduction <add>, %118, %cst_41 [1] : vector<8x1024xf32> to vector<8xf32>
    %120 = vector.shape_cast %119 : vector<8xf32> to vector<8x1xf32>
    %121 = arith.addf %110, %120 : vector<8x1xf32>
    %c11_i32 = arith.constant 11 : i32
    %c1024_i32_42 = arith.constant 1024 : i32
    %122 = arith.muli %c11_i32, %c1024_i32_42 : i32
    %123 = tpu.assume_multiple %122, 1024 : i32
    %c0_43 = arith.constant 0 : index
    %124 = arith.index_cast %123 : i32 to index
    %125 = vector.load %arg1[%c0_43, %124] : memref<8x12288xf32, #tpu.memory_space<vmem>>, vector<8x1024xf32>
    %c0_44 = arith.constant 0 : index
    %126 = arith.index_cast %123 : i32 to index
    %127 = vector.load %arg2[%c0_44, %126] : memref<1x12288xf32, #tpu.memory_space<vmem>>, vector<1x1024xf32>
    %128 = vector.broadcast %127 : vector<1x1024xf32> to vector<8x1024xf32>
    %129 = arith.mulf %125, %128 : vector<8x1024xf32>
    %cst_45 = arith.constant dense<0.000000e+00> : vector<8xf32>
    %130 = vector.multi_reduction <add>, %129, %cst_45 [1] : vector<8x1024xf32> to vector<8xf32>
    %131 = vector.shape_cast %130 : vector<8xf32> to vector<8x1xf32>
    %132 = arith.addf %121, %131 : vector<8x1xf32>
    %c12_i32 = arith.constant 12 : i32
    %c0_46 = arith.constant 0 : index
    %c0_47 = arith.constant 0 : index
    %133 = memref.load %arg3[%c0_46, %c0_47] : memref<1x1xf32, #tpu.memory_space<smem>>
    %134 = vector.broadcast %133 : f32 to vector<8x1xf32>
    %135 = arith.addf %132, %134 : vector<8x1xf32>
    %cst_48 = arith.constant 0.000000e+00 : f32
    %136 = vector.broadcast %cst_48 : f32 to vector<8x1xf32>
    %137 = arith.subf %136, %135 : vector<8x1xf32>
    %138 = math.exp %137 : vector<8x1xf32>
    %cst_49 = arith.constant 1.000000e+00 : f32
    %139 = vector.broadcast %cst_49 : f32 to vector<8x1xf32>
    %140 = arith.addf %139, %138 : vector<8x1xf32>
    %141 = tpu.reciprocal %140 {approx = true} : vector<8x1xf32> -> vector<8x1xf32>
    %c0_50 = arith.constant 0 : index
    %c0_51 = arith.constant 0 : index
    %142 = vector.load %arg4[%c0_50, %c0_51] : memref<8x1xf32, #tpu.memory_space<vmem>>, vector<8x1xf32>
    tpu.vector_store %arg4[%c0_50, %c0_51], %141 {strides = array<i32>} : memref<8x1xf32, #tpu.memory_space<vmem>>, vector<8x1xf32>,
    return
  }
  func.func @transform_0(%arg0: i32) -> (i32, i32) {
    %c0_i32 = arith.constant 0 : i32
    %c0_i32_0 = arith.constant 0 : i32
    return %arg0, %c0_i32 : i32, i32
  }
  func.func @transform_1(%arg0: i32) -> (i32, i32) {
    %c0_i32 = arith.constant 0 : i32
    %c0_i32_0 = arith.constant 0 : i32
    %c0_i32_1 = arith.constant 0 : i32
    return %c0_i32, %c0_i32_0 : i32, i32
  }
  func.func @transform_2(%arg0: i32) -> (i32, i32) {
    %c0_i32 = arith.constant 0 : i32
    %c0_i32_0 = arith.constant 0 : i32
    %c0_i32_1 = arith.constant 0 : i32
    return %c0_i32, %c0_i32_0 : i32, i32
  }
  func.func @transform_3(%arg0: i32) -> (i32, i32) {
    %c0_i32 = arith.constant 0 : i32
    %c0_i32_0 = arith.constant 0 : i32
    return %arg0, %c0_i32 : i32, i32
  }
}

</mosaic_0001>

<llo_original>
// kernel: tpu_custom_call.1
$region0: #{tpu_custom_call.1}
  #allocation0 [shape = 'u32[]', space=smem, size = 0x4, offset = 0x4, fixed_abs, tag = 'smem constant byte address 0x4 - core index']
  #allocation1 [shape = 'u32[144,128]{1,0:T(1,128)}', space=vmem, size = 0x12000, scoped, tag = 'internal scratch']
  #allocation2 [shape = 'f32[1,1]{1,0:T(1,128)S(6)}', space=smem, size = 0x200, scoped, tag = 'scoped memory for tpu_custom_call.1']
  %s0 = inlined_call_operand.hbm [shape: f32[2,12288], index: 0, kind: input, shape index: {}]
  %s1 = inlined_call_operand.hbm [shape: f32[1,12288], index: 1, kind: input, shape index: {}]
  %s2 = inlined_call_operand.<no memory space> [shape: f32[1,1], index: 2, kind: input, shape index: {}]
  %s3 = inlined_call_operand.vmem [shape: f32[2,1], index: 3, kind: output, shape index: {}]
  %s4 = sld [smem:[#allocation0]]
  $region60: #{tpu_custom_call.1} parent=0
    _
  %s6 = ssub.s32 1, %s4
  %s7 = scalar_select 0, %s6, %s4
  %8 = sst [smem:[#allocation2]] %s2
  $region1: #{tpu_custom_call.1} parent=0
    #allocation3 [shape = 'u8[393216]{0}', space=vmem, size = 0x60000, scoped, tag = 'input window, operand 0, single buffered']
    #allocation4 [shape = 's32[1]{0}', space=sflag, size = 0x4, scoped, tag = 'scoped memory for tpu_custom_call.1']
    #allocation5 [shape = 'u8[49152]{0}', space=vmem, size = 0xc000, scoped, tag = 'input window, operand 1, single buffered']
    #allocation6 [shape = 's32[1]{0}', space=sflag, size = 0x4, scoped, tag = 'scoped memory for tpu_custom_call.1']
    #allocation7 [shape = 'u8[4096]{0}', space=vmem, size = 0x1000, scoped, tag = 'output window, operand 0, single buffered']
    %9 = vsyncpa [#allocation4], 0
    %10 = vsyncpa [#allocation6], 0
    // Predicated region
    $region2: #{tpu_custom_call.1} parent=1 // pred_check
      _
    $region3: #{tpu_custom_call.1} parent=1 // pred_check_branch
      %12 = sbr.rel (0) target = $region5
    $region4: #{tpu_custom_call.1} parent=1 // pred_region
      %s14 = ssub.s32 12288, 3072
      %15 = vsyncadd [#allocation4], %s14
      %s16 = sshll.u32 [#allocation3], 4
      %s17 = int_to_ptr.vmem [resolvable:$true] %s16
      %22 = dma.hbm_to_vmem [thread:$0]  %s0, 3072, %s17, [#allocation4], 3072, 3072, 192
    $region5: #{tpu_custom_call.1} parent=1 // pred_fallthru
      _
    // Predicated region
    $region6: #{tpu_custom_call.1} parent=1 // pred_check
      _
    $region7: #{tpu_custom_call.1} parent=1 // pred_check_branch
      %24 = sbr.rel (0) target = $region9
    $region8: #{tpu_custom_call.1} parent=1 // pred_region
      %s26 = ssub.s32 1536, 1536
      %27 = vsyncadd [#allocation6], %s26
      %s29 = sshll.u32 [#allocation5], 4
      %s30 = int_to_ptr.vmem [resolvable:$true] %s29
      %32 = dma.hbm_to_vmem [thread:$0]  %s1, 1536, %s30, [#allocation6]
    $region9: #{tpu_custom_call.1} parent=1 // pred_fallthru
      _
    // Predicated region
    $region10: #{tpu_custom_call.1} parent=1 // pred_check
      _
    $region11: #{tpu_custom_call.1} parent=1 // pred_check_branch
      %34 = sbr.rel (0) target = $region13
    $region12: #{tpu_custom_call.1} parent=1 // pred_region
      _
    $region13: #{tpu_custom_call.1} parent=1 // pred_fallthru
      _
    // Predicated region
    $region14: #{tpu_custom_call.1} parent=1 // pred_check
      _
    $region15: #{tpu_custom_call.1} parent=1 // pred_check_branch
      %36 = sbr.rel (0) target = $region17
    $region16: #{tpu_custom_call.1} parent=1 // pred_region
      %37 = dma.done [#allocation4], 12288
    $region17: #{tpu_custom_call.1} parent=1 // pred_fallthru
      _
    // Predicated region
    $region18: #{tpu_custom_call.1} parent=1 // pred_check
      _
    $region19: #{tpu_custom_call.1} parent=1 // pred_check_branch
      %39 = sbr.rel (0) target = $region21
    $region20: #{tpu_custom_call.1} parent=1 // pred_region
      %40 = dma.done [#allocation6], 1536
    $region21: #{tpu_custom_call.1} parent=1 // pred_fallthru
      _
    %v41 = vld [vmem:[#allocation3] sm:$0xff]
    %v42 = vld [vmem:[#allocation3 + $0x8] sm:$0xff]
    %v43 = vld [vmem:[#allocation3 + $0xc0] sm:$0xff]
    %v44 = vld [vmem:[#allocation3 + $0xc8] sm:$0xff]
    %v45 = vld [vmem:[#allocation3 + $0x180] sm:$0xff]
    %v46 = vld [vmem:[#allocation3 + $0x188] sm:$0xff]
    %v47 = vld [vmem:[#allocation3 + $0x240] sm:$0xff]
    %v48 = vld [vmem:[#allocation3 + $0x248] sm:$0xff]
    %v49 = vld [vmem:[#allocation5] sm:$0xff]
    %v51 = vlaneseq
    %v52 = vshrl.u32 %v51, 7
    %v53 = vsub.s32 0, %v52
    %v54 = vrot.slane %v49, %v53
    %v55 = vlaneseq
    %v56 = vshrl.u32 %v55, 7
    %v57 = vsub.s32 1, %v56
    %v58 = vrot.slane %v49, %v57
    %v59 = vlaneseq
    %v60 = vshrl.u32 %v59, 7
    %v61 = vsub.s32 2, %v60
    %v62 = vrot.slane %v49, %v61
    %v63 = vlaneseq
    %v64 = vshrl.u32 %v63, 7
    %v65 = vsub.s32 3, %v64
    %v66 = vrot.slane %v49, %v65
    %v67 = vlaneseq
    %v68 = vshrl.u32 %v67, 7
    %v69 = vsub.s32 4, %v68
    %v70 = vrot.slane %v49, %v69
    %v71 = vlaneseq
    %v72 = vshrl.u32 %v71, 7
    %v73 = vsub.s32 5, %v72
    %v74 = vrot.slane %v49, %v73
    %v75 = vlaneseq
    %v76 = vshrl.u32 %v75, 7
    %v77 = vsub.s32 6, %v76
    %v78 = vrot.slane %v49, %v77
    %v79 = vlaneseq
    %v80 = vshrl.u32 %v79, 7
    %v81 = vsub.s32 7, %v80
    %v82 = vrot.slane %v49, %v81
    %v83 = vcombine.low %v54, %v58
    %v84 = vcombine.high %v54, %v58
    %v85 = vcombine.low %v62, %v66
    %v86 = vcombine.high %v62, %v66
    %v88 = vunpack.c.l.s4 1983009808
    %v89 = vunpack.c.0.s8 %v88
    %v90 = vlaneseq
    %v91 = vshrl.u32 %v90, 7
    %v92 = vsub.s32 %v89, %v91
    %v93 = vrot.slane %v83, %v92
    %v95 = vunpack.c.l.s4 1983009808
    %v96 = vunpack.c.0.s8 %v95
    %v97 = vlaneseq
    %v98 = vshrl.u32 %v97, 7
    %v99 = vsub.s32 %v96, %v98
    %v100 = vrot.slane %v84, %v99
    %v102 = vunpack.c.l.s4 1983009808
    %v103 = vunpack.c.0.s8 %v102
    %v104 = vlaneseq
    %v105 = vshrl.u32 %v104, 7
    %v106 = vsub.s32 %v103, %v105
    %v107 = vrot.slane %v85, %v106
    %v109 = vunpack.c.l.s4 1983009808
    %v110 = vunpack.c.0.s8 %v109
    %v111 = vlaneseq
    %v112 = vshrl.u32 %v111, 7
    %v113 = vsub.s32 %v110, %v112
    %v114 = vrot.slane %v86, %v113
    %v115 = vcombine.low %v93, %v107
    %v116 = vcombine.high %v93, %v107
    %v117 = vcombine.low %v100, %v114
    %v118 = vcombine.high %v100, %v114
    %v119 = vcombine.low %v70, %v74
    %v120 = vcombine.high %v70, %v74
    %v121 = vcombine.low %v78, %v82
    %v122 = vcombine.high %v78, %v82
    %v124 = vunpack.c.l.s4 1983009808
    %v125 = vunpack.c.0.s8 %v124
    %v126 = vlaneseq
    %v127 = vshrl.u32 %v126, 7
    %v128 = vsub.s32 %v125, %v127
    %v129 = vrot.slane %v119, %v128
    %v131 = vunpack.c.l.s4 1983009808
    %v132 = vunpack.c.0.s8 %v131
    %v133 = vlaneseq
    %v134 = vshrl.u32 %v133, 7
    %v135 = vsub.s32 %v132, %v134
    %v136 = vrot.slane %v120, %v135
    %v138 = vunpack.c.l.s4 1983009808
    %v139 = vunpack.c.0.s8 %v138
    %v140 = vlaneseq
    %v141 = vshrl.u32 %v140, 7
    %v142 = vsub.s32 %v139, %v141
    %v143 = vrot.slane %v121, %v142
    %v145 = vunpack.c.l.s4 1983009808
    %v146 = vunpack.c.0.s8 %v145
    %v147 = vlaneseq
    %v148 = vshrl.u32 %v147, 7
    %v149 = vsub.s32 %v146, %v148
    %v150 = vrot.slane %v122, %v149
    %v151 = vcombine.low %v129, %v143
    %v152 = vcombine.high %v129, %v143
    %v153 = vcombine.low %v136, %v150
    %v154 = vcombine.high %v136, %v150
    %v163 = vmul.f32 %v41, %v115
    %v164 = vmul.f32 %v42, %v151
    %v165 = vmul.f32 %v43, %v116
    %v166 = vmul.f32 %v44, %v152
    %v167 = vmul.f32 %v45, %v117
    %v168 = vmul.f32 %v46, %v153
    %v169 = vmul.f32 %v47, %v118
    %v170 = vmul.f32 %v48, %v154
    %v179 = vcombine.low %v163, %v165
    %v180 = vcombine.high %v163, %v165
    %v181 = vcombine.low %v167, %v169
    %v182 = vcombine.high %v167, %v169
    %v184 = vunpack.c.l.s4 1983009808
    %v185 = vunpack.c.0.s8 %v184
    %v186 = vlaneseq
    %v187 = vshrl.u32 %v186, 7
    %v188 = vsub.s32 %v185, %v187
    %v189 = vrot.slane %v179, %v188
    %v191 = vunpack.c.l.s4 1983009808
    %v192 = vunpack.c.0.s8 %v191
    %v193 = vlaneseq
    %v194 = vshrl.u32 %v193, 7
    %v195 = vsub.s32 %v192, %v194
    %v196 = vrot.slane %v180, %v195
    %v198 = vunpack.c.l.s4 1983009808
    %v199 = vunpack.c.0.s8 %v198
    %v200 = vlaneseq
    %v201 = vshrl.u32 %v200, 7
    %v202 = vsub.s32 %v199, %v201
    %v203 = vrot.slane %v181, %v202
    %v205 = vunpack.c.l.s4 1983009808
    %v206 = vunpack.c.0.s8 %v205
    %v207 = vlaneseq
    %v208 = vshrl.u32 %v207, 7
    %v209 = vsub.s32 %v206, %v208
    %v210 = vrot.slane %v182, %v209
    %v211 = vcombine.low %v189, %v203
    %v212 = vcombine.high %v189, %v203
    %v213 = vcombine.low %v196, %v210
    %v214 = vcombine.high %v196, %v210
    %v215 = vcombine.low %v164, %v166
    %v216 = vcombine.high %v164, %v166
    %v217 = vcombine.low %v168, %v170
    %v218 = vcombine.high %v168, %v170
    %v220 = vunpack.c.l.s4 1983009808
    %v221 = vunpack.c.0.s8 %v220
    %v222 = vlaneseq
    %v223 = vshrl.u32 %v222, 7
    %v224 = vsub.s32 %v221, %v223
    %v225 = vrot.slane %v215, %v224
    %v227 = vunpack.c.l.s4 1983009808
    %v228 = vunpack.c.0.s8 %v227
    %v229 = vlaneseq
    %v230 = vshrl.u32 %v229, 7
    %v231 = vsub.s32 %v228, %v230
    %v232 = vrot.slane %v216, %v231
    %v234 = vunpack.c.l.s4 1983009808
    %v235 = vunpack.c.0.s8 %v234
    %v236 = vlaneseq
    %v237 = vshrl.u32 %v236, 7
    %v238 = vsub.s32 %v235, %v237
    %v239 = vrot.slane %v217, %v238
    %v241 = vunpack.c.l.s4 1983009808
    %v242 = vunpack.c.0.s8 %v241
    %v243 = vlaneseq
    %v244 = vshrl.u32 %v243, 7
    %v245 = vsub.s32 %v242, %v244
    %v246 = vrot.slane %v218, %v245
    %v247 = vcombine.low %v225, %v239
    %v248 = vcombine.high %v225, %v239
    %v249 = vcombine.low %v232, %v246
    %v250 = vcombine.high %v232, %v246
    %v259 = vadd.f32 %v211, %v212
    %v260 = vadd.f32 %v259, %v213
    %v261 = vadd.f32 %v260, %v214
    %v262 = vadd.f32 %v261, %v247
    %v263 = vadd.f32 %v262, %v248
    %v264 = vadd.f32 %v263, %v249
    %v265 = vadd.f32 %v264, %v250
    %266 = vadd.xlane.f32.xlu0 %v265
    %v267 = vpop.xlane.xlu0 %266
    %v268 = vadd.f32 %v267, 0.0
    %s269 = scalar_lea.vmem [#allocation3], 16
    %v270 = vld [vmem:[%s269] sm:$0xff]
    %v271 = vld [vmem:[%s269 + $0x8] sm:$0xff]
    %v272 = vld [vmem:[%s269 + $0xc0] sm:$0xff]
    %v273 = vld [vmem:[%s269 + $0xc8] sm:$0xff]
    %v274 = vld [vmem:[%s269 + $0x180] sm:$0xff]
    %v275 = vld [vmem:[%s269 + $0x188] sm:$0xff]
    %v276 = vld [vmem:[%s269 + $0x240] sm:$0xff]
    %v277 = vld [vmem:[%s269 + $0x248] sm:$0xff]
    %s278 = scalar_lea.vmem [#allocation5], 8
    %v279 = vld [vmem:[%s278] sm:$0xff]
    %v281 = vlaneseq
    %v282 = vshrl.u32 %v281, 7
    %v283 = vsub.s32 0, %v282
    %v284 = vrot.slane %v279, %v283
    %v285 = vlaneseq
    %v286 = vshrl.u32 %v285, 7
    %v287 = vsub.s32 1, %v286
    %v288 = vrot.slane %v279, %v287
    %v289 = vlaneseq
    %v290 = vshrl.u32 %v289, 7
    %v291 = vsub.s32 2, %v290
    %v292 = vrot.slane %v279, %v291
    %v293 = vlaneseq
    %v294 = vshrl.u32 %v293, 7
    %v295 = vsub.s32 3, %v294
    %v296 = vrot.slane %v279, %v295
    %v297 = vlaneseq
    %v298 = vshrl.u32 %v297, 7
    %v299 = vsub.s32 4, %v298
    %v300 = vrot.slane %v279, %v299
    %v301 = vlaneseq
    %v302 = vshrl.u32 %v301, 7
    %v303 = vsub.s32 5, %v302
    %v304 = vrot.slane %v279, %v303
    %v305 = vlaneseq
    %v306 = vshrl.u32 %v305, 7
    %v307 = vsub.s32 6, %v306
    %v308 = vrot.slane %v279, %v307
    %v309 = vlaneseq
    %v310 = vshrl.u32 %v309, 7
    %v311 = vsub.s32 7, %v310
    %v312 = vrot.slane %v279, %v311
    %v313 = vcombine.low %v284, %v288
    %v314 = vcombine.high %v284, %v288
    %v315 = vcombine.low %v292, %v296
    %v316 = vcombine.high %v292, %v296
    %v318 = vunpack.c.l.s4 1983009808
    %v319 = vunpack.c.0.s8 %v318
    %v320 = vlaneseq
    %v321 = vshrl.u32 %v320, 7
    %v322 = vsub.s32 %v319, %v321
    %v323 = vrot.slane %v313, %v322
    %v325 = vunpack.c.l.s4 1983009808
    %v326 = vunpack.c.0.s8 %v325
    %v327 = vlaneseq
    %v328 = vshrl.u32 %v327, 7
    %v329 = vsub.s32 %v326, %v328
    %v330 = vrot.slane %v314, %v329
    %v332 = vunpack.c.l.s4 1983009808
    %v333 = vunpack.c.0.s8 %v332
    %v334 = vlaneseq
    %v335 = vshrl.u32 %v334, 7
    %v336 = vsub.s32 %v333, %v335
    %v337 = vrot.slane %v315, %v336
    %v339 = vunpack.c.l.s4 1983009808
    %v340 = vunpack.c.0.s8 %v339
    %v341 = vlaneseq
    %v342 = vshrl.u32 %v341, 7
    %v343 = vsub.s32 %v340, %v342
    %v344 = vrot.slane %v316, %v343
    %v345 = vcombine.low %v323, %v337
    %v346 = vcombine.high %v323, %v337
    %v347 = vcombine.low %v330, %v344
    %v348 = vcombine.high %v330, %v344
    %v349 = vcombine.low %v300, %v304
    %v350 = vcombine.high %v300, %v304
    %v351 = vcombine.low %v308, %v312
    %v352 = vcombine.high %v308, %v312
    %v354 = vunpack.c.l.s4 1983009808
    %v355 = vunpack.c.0.s8 %v354
    %v356 = vlaneseq
    %v357 = vshrl.u32 %v356, 7
    %v358 = vsub.s32 %v355, %v357
    %v359 = vrot.slane %v349, %v358
    %v361 = vunpack.c.l.s4 1983009808
    %v362 = vunpack.c.0.s8 %v361
    %v363 = vlaneseq
    %v364 = vshrl.u32 %v363, 7
    %v365 = vsub.s32 %v362, %v364
    %v366 = vrot.slane %v350, %v365
    %v368 = vunpack.c.l.s4 1983009808
    %v369 = vunpack.c.0.s8 %v368
    %v370 = vlaneseq
    %v371 = vshrl.u32 %v370, 7
    %v372 = vsub.s32 %v369, %v371
    %v373 = vrot.slane %v351, %v372
    %v375 = vunpack.c.l.s4 1983009808
    %v376 = vunpack.c.0.s8 %v375
    %v377 = vlaneseq
    %v378 = vshrl.u32 %v377, 7
    %v379 = vsub.s32 %v376, %v378
    %v380 = vrot.slane %v352, %v379
    %v381 = vcombine.low %v359, %v373
    %v382 = vcombine.high %v359, %v373
    %v383 = vcombine.low %v366, %v380
    %v384 = vcombine.high %v366, %v380
    %v393 = vmul.f32 %v270, %v345
    %v394 = vmul.f32 %v271, %v381
    %v395 = vmul.f32 %v272, %v346
    %v396 = vmul.f32 %v273, %v382
    %v397 = vmul.f32 %v274, %v347
    %v398 = vmul.f32 %v275, %v383
    %v399 = vmul.f32 %v276, %v348
    %v400 = vmul.f32 %v277, %v384
    %v409 = vcombine.low %v393, %v395
    %v410 = vcombine.high %v393, %v395
    %v411 = vcombine.low %v397, %v399
    %v412 = vcombine.high %v397, %v399
    %v414 = vunpack.c.l.s4 1983009808
    %v415 = vunpack.c.0.s8 %v414
    %v416 = vlaneseq
    %v417 = vshrl.u32 %v416, 7
    %v418 = vsub.s32 %v415, %v417
    %v419 = vrot.slane %v409, %v418
    %v421 = vunpack.c.l.s4 1983009808
    %v422 = vunpack.c.0.s8 %v421
    %v423 = vlaneseq
    %v424 = vshrl.u32 %v423, 7
    %v425 = vsub.s32 %v422, %v424
    %v426 = vrot.slane %v410, %v425
    %v428 = vunpack.c.l.s4 1983009808
    %v429 = vunpack.c.0.s8 %v428
    %v430 = vlaneseq
    %v431 = vshrl.u32 %v430, 7
    %v432 = vsub.s32 %v429, %v431
    %v433 = vrot.slane %v411, %v432
    %v435 = vunpack.c.l.s4 1983009808
    %v436 = vunpack.c.0.s8 %v435
    %v437 = vlaneseq
    %v438 = vshrl.u32 %v437, 7
    %v439 = vsub.s32 %v436, %v438
    %v440 = vrot.slane %v412, %v439
    %v441 = vcombine.low %v419, %v433
    %v442 = vcombine.high %v419, %v433
    %v443 = vcombine.low %v426, %v440
    %v444 = vcombine.high %v426, %v440
    %v445 = vcombine.low %v394, %v396
    %v446 = vcombine.high %v394, %v396
    %v447 = vcombine.low %v398, %v400
    %v448 = vcombine.high %v398, %v400
    %v450 = vunpack.c.l.s4 1983009808
    %v451 = vunpack.c.0.s8 %v450
    %v452 = vlaneseq
    %v453 = vshrl.u32 %v452, 7
    %v454 = vsub.s32 %v451, %v453
    %v455 = vrot.slane %v445, %v454
    %v457 = vunpack.c.l.s4 1983009808
    %v458 = vunpack.c.0.s8 %v457
    %v459 = vlaneseq
    %v460 = vshrl.u32 %v459, 7
    %v461 = vsub.s32 %v458, %v460
    %v462 = vrot.slane %v446, %v461
    %v464 = vunpack.c.l.s4 1983009808
    %v465 = vunpack.c.0.s8 %v464
    %v466 = vlaneseq
    %v467 = vshrl.u32 %v466, 7
    %v468 = vsub.s32 %v465, %v467
    %v469 = vrot.slane %v447, %v468
    %v471 = vunpack.c.l.s4 1983009808
    %v472 = vunpack.c.0.s8 %v471
    %v473 = vlaneseq
    %v474 = vshrl.u32 %v473, 7
    %v475 = vsub.s32 %v472, %v474
    %v476 = vrot.slane %v448, %v475
    %v477 = vcombine.low %v455, %v469
    %v478 = vcombine.high %v455, %v469
    %v479 = vcombine.low %v462, %v476
    %v480 = vcombine.high %v462, %v476
    %v489 = vadd.f32 %v441, %v442
    %v490 = vadd.f32 %v489, %v443
    %v491 = vadd.f32 %v490, %v444
    %v492 = vadd.f32 %v491, %v477
    %v493 = vadd.f32 %v492, %v478
    %v494 = vadd.f32 %v493, %v479
    %v495 = vadd.f32 %v494, %v480
    %496 = vadd.xlane.f32.xlu0 %v495
    %v497 = vpop.xlane.xlu0 %496
    %v498 = vadd.f32 %v268, %v497
    %s499 = scalar_lea.vmem [#allocation3], 32
    %v500 = vld [vmem:[%s499] sm:$0xff]
    %v501 = vld [vmem:[%s499 + $0x8] sm:$0xff]
    %v502 = vld [vmem:[%s499 + $0xc0] sm:$0xff]
    %v503 = vld [vmem:[%s499 + $0xc8] sm:$0xff]
    %v504 = vld [vmem:[%s499 + $0x180] sm:$0xff]
    %v505 = vld [vmem:[%s499 + $0x188] sm:$0xff]
    %v506 = vld [vmem:[%s499 + $0x240] sm:$0xff]
    %v507 = vld [vmem:[%s499 + $0x248] sm:$0xff]
    %s508 = scalar_lea.vmem [#allocation5], 16
    %v509 = vld [vmem:[%s508] sm:$0xff]
    %v511 = vlaneseq
    %v512 = vshrl.u32 %v511, 7
    %v513 = vsub.s32 0, %v512
    %v514 = vrot.slane %v509, %v513
    %v515 = vlaneseq
    %v516 = vshrl.u32 %v515, 7
    %v517 = vsub.s32 1, %v516
    %v518 = vrot.slane %v509, %v517
    %v519 = vlaneseq
    %v520 = vshrl.u32 %v519, 7
    %v521 = vsub.s32 2, %v520
    %v522 = vrot.slane %v509, %v521
    %v523 = vlaneseq
    %v524 = vshrl.u32 %v523, 7
    %v525 = vsub.s32 3, %v524
    %v526 = vrot.slane %v509, %v525
    %v527 = vlaneseq
    %v528 = vshrl.u32 %v527, 7
    %v529 = vsub.s32 4, %v528
    %v530 = vrot.slane %v509, %v529
    %v531 = vlaneseq
    %v532 = vshrl.u32 %v531, 7
    %v533 = vsub.s32 5, %v532
    %v534 = vrot.slane %v509, %v533
    %v535 = vlaneseq
    %v536 = vshrl.u32 %v535, 7
    %v537 = vsub.s32 6, %v536
    %v538 = vrot.slane %v509, %v537
    %v539 = vlaneseq
    %v540 = vshrl.u32 %v539, 7
    %v541 = vsub.s32 7, %v540
    %v542 = vrot.slane %v509, %v541
    %v543 = vcombine.low %v514, %v518
    %v544 = vcombine.high %v514, %v518
    %v545 = vcombine.low %v522, %v526
    %v546 = vcombine.high %v522, %v526
    %v548 = vunpack.c.l.s4 1983009808
    %v549 = vunpack.c.0.s8 %v548
    %v550 = vlaneseq
    %v551 = vshrl.u32 %v550, 7
    %v552 = vsub.s32 %v549, %v551
    %v553 = vrot.slane %v543, %v552
    %v555 = vunpack.c.l.s4 1983009808
    %v556 = vunpack.c.0.s8 %v555
    %v557 = vlaneseq
    %v558 = vshrl.u32 %v557, 7
    %v559 = vsub.s32 %v556, %v558
    %v560 = vrot.slane %v544, %v559
    %v562 = vunpack.c.l.s4 1983009808
    %v563 = vunpack.c.0.s8 %v562
    %v564 = vlaneseq
    %v565 = vshrl.u32 %v564, 7
    %v566 = vsub.s32 %v563, %v565
    %v567 = vrot.slane %v545, %v566
    %v569 = vunpack.c.l.s4 1983009808
    %v570 = vunpack.c.0.s8 %v569
    %v571 = vlaneseq
    %v572 = vshrl.u32 %v571, 7
    %v573 = vsub.s32 %v570, %v572
    %v574 = vrot.slane %v546, %v573
    %v575 = vcombine.low %v553, %v567
    %v576 = vcombine.high %v553, %v567
    %v577 = vcombine.low %v560, %v574
    %v578 = vcombine.high %v560, %v574
    %v579 = vcombine.low %v530, %v534
    %v580 = vcombine.high %v530, %v534
    %v581 = vcombine.low %v538, %v542
    %v582 = vcombine.high %v538, %v542
    %v584 = vunpack.c.l.s4 1983009808
    %v585 = vunpack.c.0.s8 %v584
    %v586 = vlaneseq
    %v587 = vshrl.u32 %v586, 7
    %v588 = vsub.s32 %v585, %v587
    %v589 = vrot.slane %v579, %v588
    %v591 = vunpack.c.l.s4 1983009808
    %v592 = vunpack.c.0.s8 %v591
    %v593 = vlaneseq
    %v594 = vshrl.u32 %v593, 7
    %v595 = vsub.s32 %v592, %v594
    %v596 = vrot.slane %v580, %v595
    %v598 = vunpack.c.l.s4 1983009808
    %v599 = vunpack.c.0.s8 %v598
    %v600 = vlaneseq
    %v601 = vshrl.u32 %v600, 7
    %v602 = vsub.s32 %v599, %v601
    %v603 = vrot.slane %v581, %v602
    %v605 = vunpack.c.l.s4 1983009808
    %v606 = vunpack.c.0.s8 %v605
    %v607 = vlaneseq
    %v608 = vshrl.u32 %v607, 7
    %v609 = vsub.s32 %v606, %v608
    %v610 = vrot.slane %v582, %v609
    %v611 = vcombine.low %v589, %v603
    %v612 = vcombine.high %v589, %v603
    %v613 = vcombine.low %v596, %v610
    %v614 = vcombine.high %v596, %v610
    %v623 = vmul.f32 %v500, %v575
    %v624 = vmul.f32 %v501, %v611
    %v625 = vmul.f32 %v502, %v576
    %v626 = vmul.f32 %v503, %v612
    %v627 = vmul.f32 %v504, %v577
    %v628 = vmul.f32 %v505, %v613
    %v629 = vmul.f32 %v506, %v578
    %v630 = vmul.f32 %v507, %v614
    %v639 = vcombine.low %v623, %v625
    %v640 = vcombine.high %v623, %v625
    %v641 = vcombine.low %v627, %v629
    %v642 = vcombine.high %v627, %v629
    %v644 = vunpack.c.l.s4 1983009808
    %v645 = vunpack.c.0.s8 %v644
    %v646 = vlaneseq
    %v647 = vshrl.u32 %v646, 7
    %v648 = vsub.s32 %v645, %v647
    %v649 = vrot.slane %v639, %v648
    %v651 = vunpack.c.l.s4 1983009808
    %v652 = vunpack.c.0.s8 %v651
    %v653 = vlaneseq
    %v654 = vshrl.u32 %v653, 7
    %v655 = vsub.s32 %v652, %v654
    %v656 = vrot.slane %v640, %v655
    %v658 = vunpack.c.l.s4 1983009808
    %v659 = vunpack.c.0.s8 %v658
    %v660 = vlaneseq
    %v661 = vshrl.u32 %v660, 7
    %v662 = vsub.s32 %v659, %v661
    %v663 = vrot.slane %v641, %v662
    %v665 = vunpack.c.l.s4 1983009808
    %v666 = vunpack.c.0.s8 %v665
    %v667 = vlaneseq
    %v668 = vshrl.u32 %v667, 7
    %v669 = vsub.s32 %v666, %v668
    %v670 = vrot.slane %v642, %v669
    %v671 = vcombine.low %v649, %v663
    %v672 = vcombine.high %v649, %v663
    %v673 = vcombine.low %v656, %v670
    %v674 = vcombine.high %v656, %v670
    %v675 = vcombine.low %v624, %v626
    %v676 = vcombine.high %v624, %v626
    %v677 = vcombine.low %v628, %v630
    %v678 = vcombine.high %v628, %v630
    %v680 = vunpack.c.l.s4 1983009808
    %v681 = vunpack.c.0.s8 %v680
    %v682 = vlaneseq
    %v683 = vshrl.u32 %v682, 7
    %v684 = vsub.s32 %v681, %v683
    %v685 = vrot.slane %v675, %v684
    %v687 = vunpack.c.l.s4 1983009808
    %v688 = vunpack.c.0.s8 %v687
    %v689 = vlaneseq
    %v690 = vshrl.u32 %v689, 7
    %v691 = vsub.s32 %v688, %v690
    %v692 = vrot.slane %v676, %v691
    %v694 = vunpack.c.l.s4 1983009808
    %v695 = vunpack.c.0.s8 %v694
    %v696 = vlaneseq
    %v697 = vshrl.u32 %v696, 7
    %v698 = vsub.s32 %v695, %v697
    %v699 = vrot.slane %v677, %v698
    %v701 = vunpack.c.l.s4 1983009808
    %v702 = vunpack.c.0.s8 %v701
    %v703 = vlaneseq
    %v704 = vshrl.u32 %v703, 7
    %v705 = vsub.s32 %v702, %v704
    %v706 = vrot.slane %v678, %v705
    %v707 = vcombine.low %v685, %v699
    %v708 = vcombine.high %v685, %v699
    %v709 = vcombine.low %v692, %v706
    %v710 = vcombine.high %v692, %v706
    %v719 = vadd.f32 %v671, %v672
    %v720 = vadd.f32 %v719, %v673
    %v721 = vadd.f32 %v720, %v674
    %v722 = vadd.f32 %v721, %v707
    %v723 = vadd.f32 %v722, %v708
    %v724 = vadd.f32 %v723, %v709
    %v725 = vadd.f32 %v724, %v710
    %726 = vadd.xlane.f32.xlu0 %v725
    %v727 = vpop.xlane.xlu0 %726
    %v728 = vadd.f32 %v498, %v727
    %s729 = scalar_lea.vmem [#allocation3], 48
    %v730 = vld [vmem:[%s729] sm:$0xff]
    %v731 = vld [vmem:[%s729 + $0x8] sm:$0xff]
    %v732 = vld [vmem:[%s729 + $0xc0] sm:$0xff]
    %v733 = vld [vmem:[%s729 + $0xc8] sm:$0xff]
    %v734 = vld [vmem:[%s729 + $0x180] sm:$0xff]
    %v735 = vld [vmem:[%s729 + $0x188] sm:$0xff]
    %v736 = vld [vmem:[%s729 + $0x240] sm:$0xff]
    %v737 = vld [vmem:[%s729 + $0x248] sm:$0xff]
    %s738 = scalar_lea.vmem [#allocation5], 24
    %v739 = vld [vmem:[%s738] sm:$0xff]
    %v741 = vlaneseq
    %v742 = vshrl.u32 %v741, 7
    %v743 = vsub.s32 0, %v742
    %v744 = vrot.slane %v739, %v743
    %v745 = vlaneseq
    %v746 = vshrl.u32 %v745, 7
    %v747 = vsub.s32 1, %v746
    %v748 = vrot.slane %v739, %v747
    %v749 = vlaneseq
    %v750 = vshrl.u32 %v749, 7
    %v751 = vsub.s32 2, %v750
    %v752 = vrot.slane %v739, %v751
    %v753 = vlaneseq
    %v754 = vshrl.u32 %v753, 7
    %v755 = vsub.s32 3, %v754
    %v756 = vrot.slane %v739, %v755
    %v757 = vlaneseq
    %v758 = vshrl.u32 %v757, 7
    %v759 = vsub.s32 4, %v758
    %v760 = vrot.slane %v739, %v759
    %v761 = vlaneseq
    %v762 = vshrl.u32 %v761, 7
    %v763 = vsub.s32 5, %v762
    %v764 = vrot.slane %v739, %v763
    %v765 = vlaneseq
    %v766 = vshrl.u32 %v765, 7
    %v767 = vsub.s32 6, %v766
    %v768 = vrot.slane %v739, %v767
    %v769 = vlaneseq
    %v770 = vshrl.u32 %v769, 7
    %v771 = vsub.s32 7, %v770
    %v772 = vrot.slane %v739, %v771
    %v773 = vcombine.low %v744, %v748
    %v774 = vcombine.high %v744, %v748
    %v775 = vcombine.low %v752, %v756
    %v776 = vcombine.high %v752, %v756
    %v778 = vunpack.c.l.s4 1983009808
    %v779 = vunpack.c.0.s8 %v778
    %v780 = vlaneseq
    %v781 = vshrl.u32 %v780, 7
    %v782 = vsub.s32 %v779, %v781
    %v783 = vrot.slane %v773, %v782
    %v785 = vunpack.c.l.s4 1983009808
    %v786 = vunpack.c.0.s8 %v785
    %v787 = vlaneseq
    %v788 = vshrl.u32 %v787, 7
    %v789 = vsub.s32 %v786, %v788
    %v790 = vrot.slane %v774, %v789
    %v792 = vunpack.c.l.s4 1983009808
    %v793 = vunpack.c.0.s8 %v792
    %v794 = vlaneseq
    %v795 = vshrl.u32 %v794, 7
    %v796 = vsub.s32 %v793, %v795
    %v797 = vrot.slane %v775, %v796
    %v799 = vunpack.c.l.s4 1983009808
    %v800 = vunpack.c.0.s8 %v799
    %v801 = vlaneseq
    %v802 = vshrl.u32 %v801, 7
    %v803 = vsub.s32 %v800, %v802
    %v804 = vrot.slane %v776, %v803
    %v805 = vcombine.low %v783, %v797
    %v806 = vcombine.high %v783, %v797
    %v807 = vcombine.low %v790, %v804
    %v808 = vcombine.high %v790, %v804
    %v809 = vcombine.low %v760, %v764
    %v810 = vcombine.high %v760, %v764
    %v811 = vcombine.low %v768, %v772
    %v812 = vcombine.high %v768, %v772
    %v814 = vunpack.c.l.s4 1983009808
    %v815 = vunpack.c.0.s8 %v814
    %v816 = vlaneseq
    %v817 = vshrl.u32 %v816, 7
    %v818 = vsub.s32 %v815, %v817
    %v819 = vrot.slane %v809, %v818
    %v821 = vunpack.c.l.s4 1983009808
    %v822 = vunpack.c.0.s8 %v821
    %v823 = vlaneseq
    %v824 = vshrl.u32 %v823, 7
    %v825 = vsub.s32 %v822, %v824
    %v826 = vrot.slane %v810, %v825
    %v828 = vunpack.c.l.s4 1983009808
    %v829 = vunpack.c.0.s8 %v828
    %v830 = vlaneseq
    %v831 = vshrl.u32 %v830, 7
    %v832 = vsub.s32 %v829, %v831
    %v833 = vrot.slane %v811, %v832
    %v835 = vunpack.c.l.s4 1983009808
    %v836 = vunpack.c.0.s8 %v835
    %v837 = vlaneseq
    %v838 = vshrl.u32 %v837, 7
    %v839 = vsub.s32 %v836, %v838
    %v840 = vrot.slane %v812, %v839
    %v841 = vcombine.low %v819, %v833
    %v842 = vcombine.high %v819, %v833
    %v843 = vcombine.low %v826, %v840
    %v844 = vcombine.high %v826, %v840
    %v853 = vmul.f32 %v730, %v805
    %v854 = vmul.f32 %v731, %v841
    %v855 = vmul.f32 %v732, %v806
    %v856 = vmul.f32 %v733, %v842
    %v857 = vmul.f32 %v734, %v807
    %v858 = vmul.f32 %v735, %v843
    %v859 = vmul.f32 %v736, %v808
    %v860 = vmul.f32 %v737, %v844
    %v869 = vcombine.low %v853, %v855
    %v870 = vcombine.high %v853, %v855
    %v871 = vcombine.low %v857, %v859
    %v872 = vcombine.high %v857, %v859
    %v874 = vunpack.c.l.s4 1983009808
    %v875 = vunpack.c.0.s8 %v874
    %v876 = vlaneseq
    %v877 = vshrl.u32 %v876, 7
    %v878 = vsub.s32 %v875, %v877
    %v879 = vrot.slane %v869, %v878
    %v881 = vunpack.c.l.s4 1983009808
    %v882 = vunpack.c.0.s8 %v881
    %v883 = vlaneseq
    %v884 = vshrl.u32 %v883, 7
    %v885 = vsub.s32 %v882, %v884
    %v886 = vrot.slane %v870, %v885
    %v888 = vunpack.c.l.s4 1983009808
    %v889 = vunpack.c.0.s8 %v888
    %v890 = vlaneseq
    %v891 = vshrl.u32 %v890, 7
    %v892 = vsub.s32 %v889, %v891
    %v893 = vrot.slane %v871, %v892
    %v895 = vunpack.c.l.s4 1983009808
    %v896 = vunpack.c.0.s8 %v895
    %v897 = vlaneseq
    %v898 = vshrl.u32 %v897, 7
    %v899 = vsub.s32 %v896, %v898
    %v900 = vrot.slane %v872, %v899
    %v901 = vcombine.low %v879, %v893
    %v902 = vcombine.high %v879, %v893
    %v903 = vcombine.low %v886, %v900
    %v904 = vcombine.high %v886, %v900
    %v905 = vcombine.low %v854, %v856
    %v906 = vcombine.high %v854, %v856
    %v907 = vcombine.low %v858, %v860
    %v908 = vcombine.high %v858, %v860
    %v910 = vunpack.c.l.s4 1983009808
    %v911 = vunpack.c.0.s8 %v910
    %v912 = vlaneseq
    %v913 = vshrl.u32 %v912, 7
    %v914 = vsub.s32 %v911, %v913
    %v915 = vrot.slane %v905, %v914
    %v917 = vunpack.c.l.s4 1983009808
    %v918 = vunpack.c.0.s8 %v917
    %v919 = vlaneseq
    %v920 = vshrl.u32 %v919, 7
    %v921 = vsub.s32 %v918, %v920
    %v922 = vrot.slane %v906, %v921
    %v924 = vunpack.c.l.s4 1983009808
    %v925 = vunpack.c.0.s8 %v924
    %v926 = vlaneseq
    %v927 = vshrl.u32 %v926, 7
    %v928 = vsub.s32 %v925, %v927
    %v929 = vrot.slane %v907, %v928
    %v931 = vunpack.c.l.s4 1983009808
    %v932 = vunpack.c.0.s8 %v931
    %v933 = vlaneseq
    %v934 = vshrl.u32 %v933, 7
    %v935 = vsub.s32 %v932, %v934
    %v936 = vrot.slane %v908, %v935
    %v937 = vcombine.low %v915, %v929
    %v938 = vcombine.high %v915, %v929
    %v939 = vcombine.low %v922, %v936
    %v940 = vcombine.high %v922, %v936
    %v949 = vadd.f32 %v901, %v902
    %v950 = vadd.f32 %v949, %v903
    %v951 = vadd.f32 %v950, %v904
    %v952 = vadd.f32 %v951, %v937
    %v953 = vadd.f32 %v952, %v938
    %v954 = vadd.f32 %v953, %v939
    %v955 = vadd.f32 %v954, %v940
    %956 = vadd.xlane.f32.xlu0 %v955
    %v957 = vpop.xlane.xlu0 %956
    %v958 = vadd.f32 %v728, %v957
    %s959 = scalar_lea.vmem [#allocation3], 64
    %v960 = vld [vmem:[%s959] sm:$0xff]
    %v961 = vld [vmem:[%s959 + $0x8] sm:$0xff]
    %v962 = vld [vmem:[%s959 + $0xc0] sm:$0xff]
    %v963 = vld [vmem:[%s959 + $0xc8] sm:$0xff]
    %v964 = vld [vmem:[%s959 + $0x180] sm:$0xff]
    %v965 = vld [vmem:[%s959 + $0x188] sm:$0xff]
    %v966 = vld [vmem:[%s959 + $0x240] sm:$0xff]
    %v967 = vld [vmem:[%s959 + $0x248] sm:$0xff]
    %s968 = scalar_lea.vmem [#allocation5], 32
    %v969 = vld [vmem:[%s968] sm:$0xff]
    %v971 = vlaneseq
    %v972 = vshrl.u32 %v971, 7
    %v973 = vsub.s32 0, %v972
    %v974 = vrot.slane %v969, %v973
    %v975 = vlaneseq
    %v976 = vshrl.u32 %v975, 7
    %v977 = vsub.s32 1, %v976
    %v978 = vrot.slane %v969, %v977
    %v979 = vlaneseq
    %v980 = vshrl.u32 %v979, 7
    %v981 = vsub.s32 2, %v980
    %v982 = vrot.slane %v969, %v981
    %v983 = vlaneseq
    %v984 = vshrl.u32 %v983, 7
    %v985 = vsub.s32 3, %v984
    %v986 = vrot.slane %v969, %v985
    %v987 = vlaneseq
    %v988 = vshrl.u32 %v987, 7
    %v989 = vsub.s32 4, %v988
    %v990 = vrot.slane %v969, %v989
    %v991 = vlaneseq
    %v992 = vshrl.u32 %v991, 7
    %v993 = vsub.s32 5, %v992
    %v994 = vrot.slane %v969, %v993
    %v995 = vlaneseq
    %v996 = vshrl.u32 %v995, 7
    %v997 = vsub.s32 6, %v996
    %v998 = vrot.slane %v969, %v997
    %v999 = vlaneseq
    %v1000 = vshrl.u32 %v999, 7
    %v1001 = vsub.s32 7, %v1000
    %v1002 = vrot.slane %v969, %v1001
    %v1003 = vcombine.low %v974, %v978
    %v1004 = vcombine.high %v974, %v978
    %v1005 = vcombine.low %v982, %v986
    %v1006 = vcombine.high %v982, %v986
    %v1008 = vunpack.c.l.s4 1983009808
    %v1009 = vunpack.c.0.s8 %v1008
    %v1010 = vlaneseq
    %v1011 = vshrl.u32 %v1010, 7
    %v1012 = vsub.s32 %v1009, %v1011
    %v1013 = vrot.slane %v1003, %v1012
    %v1015 = vunpack.c.l.s4 1983009808
    %v1016 = vunpack.c.0.s8 %v1015
    %v1017 = vlaneseq
    %v1018 = vshrl.u32 %v1017, 7
    %v1019 = vsub.s32 %v1016, %v1018
    %v1020 = vrot.slane %v1004, %v1019
    %v1022 = vunpack.c.l.s4 1983009808
    %v1023 = vunpack.c.0.s8 %v1022
    %v1024 = vlaneseq
    %v1025 = vshrl.u32 %v1024, 7
    %v1026 = vsub.s32 %v1023, %v1025
    %v1027 = vrot.slane %v1005, %v1026
    %v1029 = vunpack.c.l.s4 1983009808
    %v1030 = vunpack.c.0.s8 %v1029
    %v1031 = vlaneseq
    %v1032 = vshrl.u32 %v1031, 7
    %v1033 = vsub.s32 %v1030, %v1032
    %v1034 = vrot.slane %v1006, %v1033
    %v1035 = vcombine.low %v1013, %v1027
    %v1036 = vcombine.high %v1013, %v1027
    %v1037 = vcombine.low %v1020, %v1034
    %v1038 = vcombine.high %v1020, %v1034
    %v1039 = vcombine.low %v990, %v994
    %v1040 = vcombine.high %v990, %v994
    %v1041 = vcombine.low %v998, %v1002
    %v1042 = vcombine.high %v998, %v1002
    %v1044 = vunpack.c.l.s4 1983009808
    %v1045 = vunpack.c.0.s8 %v1044
    %v1046 = vlaneseq
    %v1047 = vshrl.u32 %v1046, 7
    %v1048 = vsub.s32 %v1045, %v1047
    %v1049 = vrot.slane %v1039, %v1048
    %v1051 = vunpack.c.l.s4 1983009808
    %v1052 = vunpack.c.0.s8 %v1051
    %v1053 = vlaneseq
    %v1054 = vshrl.u32 %v1053, 7
    %v1055 = vsub.s32 %v1052, %v1054
    %v1056 = vrot.slane %v1040, %v1055
    %v1058 = vunpack.c.l.s4 1983009808
    %v1059 = vunpack.c.0.s8 %v1058
    %v1060 = vlaneseq
    %v1061 = vshrl.u32 %v1060, 7
    %v1062 = vsub.s32 %v1059, %v1061
    %v1063 = vrot.slane %v1041, %v1062
    %v1065 = vunpack.c.l.s4 1983009808
    %v1066 = vunpack.c.0.s8 %v1065
    %v1067 = vlaneseq
    %v1068 = vshrl.u32 %v1067, 7
    %v1069 = vsub.s32 %v1066, %v1068
    %v1070 = vrot.slane %v1042, %v1069
    %v1071 = vcombine.low %v1049, %v1063
    %v1072 = vcombine.high %v1049, %v1063
    %v1073 = vcombine.low %v1056, %v1070
    %v1074 = vcombine.high %v1056, %v1070
    %v1083 = vmul.f32 %v960, %v1035
    %v1084 = vmul.f32 %v961, %v1071
    %v1085 = vmul.f32 %v962, %v1036
    %v1086 = vmul.f32 %v963, %v1072
    %v1087 = vmul.f32 %v964, %v1037
    %v1088 = vmul.f32 %v965, %v1073
    %v1089 = vmul.f32 %v966, %v1038
    %v1090 = vmul.f32 %v967, %v1074
    %v1099 = vcombine.low %v1083, %v1085
    %v1100 = vcombine.high %v1083, %v1085
    %v1101 = vcombine.low %v1087, %v1089
    %v1102 = vcombine.high %v1087, %v1089
    %v1104 = vunpack.c.l.s4 1983009808
    %v1105 = vunpack.c.0.s8 %v1104
    %v1106 = vlaneseq
    %v1107 = vshrl.u32 %v1106, 7
    %v1108 = vsub.s32 %v1105, %v1107
    %v1109 = vrot.slane %v1099, %v1108
    %v1111 = vunpack.c.l.s4 1983009808
    %v1112 = vunpack.c.0.s8 %v1111
    %v1113 = vlaneseq
    %v1114 = vshrl.u32 %v1113, 7
    %v1115 = vsub.s32 %v1112, %v1114
    %v1116 = vrot.slane %v1100, %v1115
    %v1118 = vunpack.c.l.s4 1983009808
    %v1119 = vunpack.c.0.s8 %v1118
    %v1120 = vlaneseq
    %v1121 = vshrl.u32 %v1120, 7
    %v1122 = vsub.s32 %v1119, %v1121
    %v1123 = vrot.slane %v1101, %v1122
    %v1125 = vunpack.c.l.s4 1983009808
    %v1126 = vunpack.c.0.s8 %v1125
    %v1127 = vlaneseq
    %v1128 = vshrl.u32 %v1127, 7
    %v1129 = vsub.s32 %v1126, %v1128
    %v1130 = vrot.slane %v1102, %v1129
    %v1131 = vcombine.low %v1109, %v1123
    %v1132 = vcombine.high %v1109, %v1123
    %v1133 = vcombine.low %v1116, %v1130
    %v1134 = vcombine.high %v1116, %v1130
    %v1135 = vcombine.low %v1084, %v1086
    %v1136 = vcombine.high %v1084, %v1086
    %v1137 = vcombine.low %v1088, %v1090
    %v1138 = vcombine.high %v1088, %v1090
    %v1140 = vunpack.c.l.s4 1983009808
    %v1141 = vunpack.c.0.s8 %v1140
    %v1142 = vlaneseq
    %v1143 = vshrl.u32 %v1142, 7
    %v1144 = vsub.s32 %v1141, %v1143
    %v1145 = vrot.slane %v1135, %v1144
    %v1147 = vunpack.c.l.s4 1983009808
    %v1148 = vunpack.c.0.s8 %v1147
    %v1149 = vlaneseq
    %v1150 = vshrl.u32 %v1149, 7
    %v1151 = vsub.s32 %v1148, %v1150
    %v1152 = vrot.slane %v1136, %v1151
    %v1154 = vunpack.c.l.s4 1983009808
    %v1155 = vunpack.c.0.s8 %v1154
    %v1156 = vlaneseq
    %v1157 = vshrl.u32 %v1156, 7
    %v1158 = vsub.s32 %v1155, %v1157
    %v1159 = vrot.slane %v1137, %v1158
    %v1161 = vunpack.c.l.s4 1983009808
    %v1162 = vunpack.c.0.s8 %v1161
    %v1163 = vlaneseq
    %v1164 = vshrl.u32 %v1163, 7
    %v1165 = vsub.s32 %v1162, %v1164
    %v1166 = vrot.slane %v1138, %v1165
    %v1167 = vcombine.low %v1145, %v1159
    %v1168 = vcombine.high %v1145, %v1159
    %v1169 = vcombine.low %v1152, %v1166
    %v1170 = vcombine.high %v1152, %v1166
    %v1179 = vadd.f32 %v1131, %v1132
    %v1180 = vadd.f32 %v1179, %v1133
    %v1181 = vadd.f32 %v1180, %v1134
    %v1182 = vadd.f32 %v1181, %v1167
    %v1183 = vadd.f32 %v1182, %v1168
    %v1184 = vadd.f32 %v1183, %v1169
    %v1185 = vadd.f32 %v1184, %v1170
    %1186 = vadd.xlane.f32.xlu0 %v1185
    %v1187 = vpop.xlane.xlu0 %1186
    %v1188 = vadd.f32 %v958, %v1187
    %s1189 = scalar_lea.vmem [#allocation3], 80
    %v1190 = vld [vmem:[%s1189] sm:$0xff]
    %v1191 = vld [vmem:[%s1189 + $0x8] sm:$0xff]
    %v1192 = vld [vmem:[%s1189 + $0xc0] sm:$0xff]
    %v1193 = vld [vmem:[%s1189 + $0xc8] sm:$0xff]
    %v1194 = vld [vmem:[%s1189 + $0x180] sm:$0xff]
    %v1195 = vld [vmem:[%s1189 + $0x188] sm:$0xff]
    %v1196 = vld [vmem:[%s1189 + $0x240] sm:$0xff]
    %v1197 = vld [vmem:[%s1189 + $0x248] sm:$0xff]
    %s1198 = scalar_lea.vmem [#allocation5], 40
    %v1199 = vld [vmem:[%s1198] sm:$0xff]
    %v1201 = vlaneseq
    %v1202 = vshrl.u32 %v1201, 7
    %v1203 = vsub.s32 0, %v1202
    %v1204 = vrot.slane %v1199, %v1203
    %v1205 = vlaneseq
    %v1206 = vshrl.u32 %v1205, 7
    %v1207 = vsub.s32 1, %v1206
    %v1208 = vrot.slane %v1199, %v1207
    %v1209 = vlaneseq
    %v1210 = vshrl.u32 %v1209, 7
    %v1211 = vsub.s32 2, %v1210
    %v1212 = vrot.slane %v1199, %v1211
    %v1213 = vlaneseq
    %v1214 = vshrl.u32 %v1213, 7
    %v1215 = vsub.s32 3, %v1214
    %v1216 = vrot.slane %v1199, %v1215
    %v1217 = vlaneseq
    %v1218 = vshrl.u32 %v1217, 7
    %v1219 = vsub.s32 4, %v1218
    %v1220 = vrot.slane %v1199, %v1219
    %v1221 = vlaneseq
    %v1222 = vshrl.u32 %v1221, 7
    %v1223 = vsub.s32 5, %v1222
    %v1224 = vrot.slane %v1199, %v1223
    %v1225 = vlaneseq
    %v1226 = vshrl.u32 %v1225, 7
    %v1227 = vsub.s32 6, %v1226
    %v1228 = vrot.slane %v1199, %v1227
    %v1229 = vlaneseq
    %v1230 = vshrl.u32 %v1229, 7
    %v1231 = vsub.s32 7, %v1230
    %v1232 = vrot.slane %v1199, %v1231
    %v1233 = vcombine.low %v1204, %v1208
    %v1234 = vcombine.high %v1204, %v1208
    %v1235 = vcombine.low %v1212, %v1216
    %v1236 = vcombine.high %v1212, %v1216
    %v1238 = vunpack.c.l.s4 1983009808
    %v1239 = vunpack.c.0.s8 %v1238
    %v1240 = vlaneseq
    %v1241 = vshrl.u32 %v1240, 7
    %v1242 = vsub.s32 %v1239, %v1241
    %v1243 = vrot.slane %v1233, %v1242
    %v1245 = vunpack.c.l.s4 1983009808
    %v1246 = vunpack.c.0.s8 %v1245
    %v1247 = vlaneseq
    %v1248 = vshrl.u32 %v1247, 7
    %v1249 = vsub.s32 %v1246, %v1248
    %v1250 = vrot.slane %v1234, %v1249
    %v1252 = vunpack.c.l.s4 1983009808
    %v1253 = vunpack.c.0.s8 %v1252
    %v1254 = vlaneseq
    %v1255 = vshrl.u32 %v1254, 7
    %v1256 = vsub.s32 %v1253, %v1255
    %v1257 = vrot.slane %v1235, %v1256
    %v1259 = vunpack.c.l.s4 1983009808
    %v1260 = vunpack.c.0.s8 %v1259
    %v1261 = vlaneseq
    %v1262 = vshrl.u32 %v1261, 7
    %v1263 = vsub.s32 %v1260, %v1262
    %v1264 = vrot.slane %v1236, %v1263
    %v1265 = vcombine.low %v1243, %v1257
    %v1266 = vcombine.high %v1243, %v1257
    %v1267 = vcombine.low %v1250, %v1264
    %v1268 = vcombine.high %v1250, %v1264
    %v1269 = vcombine.low %v1220, %v1224
    %v1270 = vcombine.high %v1220, %v1224
    %v1271 = vcombine.low %v1228, %v1232
    %v1272 = vcombine.high %v1228, %v1232
    %v1274 = vunpack.c.l.s4 1983009808
    %v1275 = vunpack.c.0.s8 %v1274
    %v1276 = vlaneseq
    %v1277 = vshrl.u32 %v1276, 7
    %v1278 = vsub.s32 %v1275, %v1277
    %v1279 = vrot.slane %v1269, %v1278
    %v1281 = vunpack.c.l.s4 1983009808
    %v1282 = vunpack.c.0.s8 %v1281
    %v1283 = vlaneseq
    %v1284 = vshrl.u32 %v1283, 7
    %v1285 = vsub.s32 %v1282, %v1284
    %v1286 = vrot.slane %v1270, %v1285
    %v1288 = vunpack.c.l.s4 1983009808
    %v1289 = vunpack.c.0.s8 %v1288
    %v1290 = vlaneseq
    %v1291 = vshrl.u32 %v1290, 7
    %v1292 = vsub.s32 %v1289, %v1291
    %v1293 = vrot.slane %v1271, %v1292
    %v1295 = vunpack.c.l.s4 1983009808
    %v1296 = vunpack.c.0.s8 %v1295
    %v1297 = vlaneseq
    %v1298 = vshrl.u32 %v1297, 7
    %v1299 = vsub.s32 %v1296, %v1298
    %v1300 = vrot.slane %v1272, %v1299
    %v1301 = vcombine.low %v1279, %v1293
    %v1302 = vcombine.high %v1279, %v1293
    %v1303 = vcombine.low %v1286, %v1300
    %v1304 = vcombine.high %v1286, %v1300
    %v1313 = vmul.f32 %v1190, %v1265
    %v1314 = vmul.f32 %v1191, %v1301
    %v1315 = vmul.f32 %v1192, %v1266
    %v1316 = vmul.f32 %v1193, %v1302
    %v1317 = vmul.f32 %v1194, %v1267
    %v1318 = vmul.f32 %v1195, %v1303
    %v1319 = vmul.f32 %v1196, %v1268
    %v1320 = vmul.f32 %v1197, %v1304
    %v1329 = vcombine.low %v1313, %v1315
    %v1330 = vcombine.high %v1313, %v1315
    %v1331 = vcombine.low %v1317, %v1319
    %v1332 = vcombine.high %v1317, %v1319
    %v1334 = vunpack.c.l.s4 1983009808
    %v1335 = vunpack.c.0.s8 %v1334
    %v1336 = vlaneseq
    %v1337 = vshrl.u32 %v1336, 7
    %v1338 = vsub.s32 %v1335, %v1337
    %v1339 = vrot.slane %v1329, %v1338
    %v1341 = vunpack.c.l.s4 1983009808
    %v1342 = vunpack.c.0.s8 %v1341
    %v1343 = vlaneseq
    %v1344 = vshrl.u32 %v1343, 7
    %v1345 = vsub.s32 %v1342, %v1344
    %v1346 = vrot.slane %v1330, %v1345
    %v1348 = vunpack.c.l.s4 1983009808
    %v1349 = vunpack.c.0.s8 %v1348
    %v1350 = vlaneseq
    %v1351 = vshrl.u32 %v1350, 7
    %v1352 = vsub.s32 %v1349, %v1351
    %v1353 = vrot.slane %v1331, %v1352
    %v1355 = vunpack.c.l.s4 1983009808
    %v1356 = vunpack.c.0.s8 %v1355
    %v1357 = vlaneseq
    %v1358 = vshrl.u32 %v1357, 7
    %v1359 = vsub.s32 %v1356, %v1358
    %v1360 = vrot.slane %v1332, %v1359
    %v1361 = vcombine.low %v1339, %v1353
    %v1362 = vcombine.high %v1339, %v1353
    %v1363 = vcombine.low %v1346, %v1360
    %v1364 = vcombine.high %v1346, %v1360
    %v1365 = vcombine.low %v1314, %v1316
    %v1366 = vcombine.high %v1314, %v1316
    %v1367 = vcombine.low %v1318, %v1320
    %v1368 = vcombine.high %v1318, %v1320
    %v1370 = vunpack.c.l.s4 1983009808
    %v1371 = vunpack.c.0.s8 %v1370
    %v1372 = vlaneseq
    %v1373 = vshrl.u32 %v1372, 7
    %v1374 = vsub.s32 %v1371, %v1373
    %v1375 = vrot.slane %v1365, %v1374
    %v1377 = vunpack.c.l.s4 1983009808
    %v1378 = vunpack.c.0.s8 %v1377
    %v1379 = vlaneseq
    %v1380 = vshrl.u32 %v1379, 7
    %v1381 = vsub.s32 %v1378, %v1380
    %v1382 = vrot.slane %v1366, %v1381
    %v1384 = vunpack.c.l.s4 1983009808
    %v1385 = vunpack.c.0.s8 %v1384
    %v1386 = vlaneseq
    %v1387 = vshrl.u32 %v1386, 7
    %v1388 = vsub.s32 %v1385, %v1387
    %v1389 = vrot.slane %v1367, %v1388
    %v1391 = vunpack.c.l.s4 1983009808
    %v1392 = vunpack.c.0.s8 %v1391
    %v1393 = vlaneseq
    %v1394 = vshrl.u32 %v1393, 7
    %v1395 = vsub.s32 %v1392, %v1394
    %v1396 = vrot.slane %v1368, %v1395
    %v1397 = vcombine.low %v1375, %v1389
    %v1398 = vcombine.high %v1375, %v1389
    %v1399 = vcombine.low %v1382, %v1396
    %v1400 = vcombine.high %v1382, %v1396
    %v1409 = vadd.f32 %v1361, %v1362
    %v1410 = vadd.f32 %v1409, %v1363
    %v1411 = vadd.f32 %v1410, %v1364
    %v1412 = vadd.f32 %v1411, %v1397
    %v1413 = vadd.f32 %v1412, %v1398
    %v1414 = vadd.f32 %v1413, %v1399
    %v1415 = vadd.f32 %v1414, %v1400
    %1416 = vadd.xlane.f32.xlu0 %v1415
    %v1417 = vpop.xlane.xlu0 %1416
    %v1418 = vadd.f32 %v1188, %v1417
    %s1419 = scalar_lea.vmem [#allocation3], 96
    %v1420 = vld [vmem:[%s1419] sm:$0xff]
    %v1421 = vld [vmem:[%s1419 + $0x8] sm:$0xff]
    %v1422 = vld [vmem:[%s1419 + $0xc0] sm:$0xff]
    %v1423 = vld [vmem:[%s1419 + $0xc8] sm:$0xff]
    %v1424 = vld [vmem:[%s1419 + $0x180] sm:$0xff]
    %v1425 = vld [vmem:[%s1419 + $0x188] sm:$0xff]
    %v1426 = vld [vmem:[%s1419 + $0x240] sm:$0xff]
    %v1427 = vld [vmem:[%s1419 + $0x248] sm:$0xff]
    %s1428 = scalar_lea.vmem [#allocation5], 48
    %v1429 = vld [vmem:[%s1428] sm:$0xff]
    %v1431 = vlaneseq
    %v1432 = vshrl.u32 %v1431, 7
    %v1433 = vsub.s32 0, %v1432
    %v1434 = vrot.slane %v1429, %v1433
    %v1435 = vlaneseq
    %v1436 = vshrl.u32 %v1435, 7
    %v1437 = vsub.s32 1, %v1436
    %v1438 = vrot.slane %v1429, %v1437
    %v1439 = vlaneseq
    %v1440 = vshrl.u32 %v1439, 7
    %v1441 = vsub.s32 2, %v1440
    %v1442 = vrot.slane %v1429, %v1441
    %v1443 = vlaneseq
    %v1444 = vshrl.u32 %v1443, 7
    %v1445 = vsub.s32 3, %v1444
    %v1446 = vrot.slane %v1429, %v1445
    %v1447 = vlaneseq
    %v1448 = vshrl.u32 %v1447, 7
    %v1449 = vsub.s32 4, %v1448
    %v1450 = vrot.slane %v1429, %v1449
    %v1451 = vlaneseq
    %v1452 = vshrl.u32 %v1451, 7
    %v1453 = vsub.s32 5, %v1452
    %v1454 = vrot.slane %v1429, %v1453
    %v1455 = vlaneseq
    %v1456 = vshrl.u32 %v1455, 7
    %v1457 = vsub.s32 6, %v1456
    %v1458 = vrot.slane %v1429, %v1457
    %v1459 = vlaneseq
    %v1460 = vshrl.u32 %v1459, 7
    %v1461 = vsub.s32 7, %v1460
    %v1462 = vrot.slane %v1429, %v1461
    %v1463 = vcombine.low %v1434, %v1438
    %v1464 = vcombine.high %v1434, %v1438
    %v1465 = vcombine.low %v1442, %v1446
    %v1466 = vcombine.high %v1442, %v1446
    %v1468 = vunpack.c.l.s4 1983009808
    %v1469 = vunpack.c.0.s8 %v1468
    %v1470 = vlaneseq
    %v1471 = vshrl.u32 %v1470, 7
    %v1472 = vsub.s32 %v1469, %v1471
    %v1473 = vrot.slane %v1463, %v1472
    %v1475 = vunpack.c.l.s4 1983009808
    %v1476 = vunpack.c.0.s8 %v1475
    %v1477 = vlaneseq
    %v1478 = vshrl.u32 %v1477, 7
    %v1479 = vsub.s32 %v1476, %v1478
    %v1480 = vrot.slane %v1464, %v1479
    %v1482 = vunpack.c.l.s4 1983009808
    %v1483 = vunpack.c.0.s8 %v1482
    %v1484 = vlaneseq
    %v1485 = vshrl.u32 %v1484, 7
    %v1486 = vsub.s32 %v1483, %v1485
    %v1487 = vrot.slane %v1465, %v1486
    %v1489 = vunpack.c.l.s4 1983009808
    %v1490 = vunpack.c.0.s8 %v1489
    %v1491 = vlaneseq
    %v1492 = vshrl.u32 %v1491, 7
    %v1493 = vsub.s32 %v1490, %v1492
    %v1494 = vrot.slane %v1466, %v1493
    %v1495 = vcombine.low %v1473, %v1487
    %v1496 = vcombine.high %v1473, %v1487
    %v1497 = vcombine.low %v1480, %v1494
    %v1498 = vcombine.high %v1480, %v1494
    %v1499 = vcombine.low %v1450, %v1454
    %v1500 = vcombine.high %v1450, %v1454
    %v1501 = vcombine.low %v1458, %v1462
    %v1502 = vcombine.high %v1458, %v1462
    %v1504 = vunpack.c.l.s4 1983009808
    %v1505 = vunpack.c.0.s8 %v1504
    %v1506 = vlaneseq
    %v1507 = vshrl.u32 %v1506, 7
    %v1508 = vsub.s32 %v1505, %v1507
    %v1509 = vrot.slane %v1499, %v1508
    %v1511 = vunpack.c.l.s4 1983009808
    %v1512 = vunpack.c.0.s8 %v1511
    %v1513 = vlaneseq
    %v1514 = vshrl.u32 %v1513, 7
    %v1515 = vsub.s32 %v1512, %v1514
    %v1516 = vrot.slane %v1500, %v1515
    %v1518 = vunpack.c.l.s4 1983009808
    %v1519 = vunpack.c.0.s8 %v1518
    %v1520 = vlaneseq
    %v1521 = vshrl.u32 %v1520, 7
    %v1522 = vsub.s32 %v1519, %v1521
    %v1523 = vrot.slane %v1501, %v1522
    %v1525 = vunpack.c.l.s4 1983009808
    %v1526 = vunpack.c.0.s8 %v1525
    %v1527 = vlaneseq
    %v1528 = vshrl.u32 %v1527, 7
    %v1529 = vsub.s32 %v1526, %v1528
    %v1530 = vrot.slane %v1502, %v1529
    %v1531 = vcombine.low %v1509, %v1523
    %v1532 = vcombine.high %v1509, %v1523
    %v1533 = vcombine.low %v1516, %v1530
    %v1534 = vcombine.high %v1516, %v1530
    %v1543 = vmul.f32 %v1420, %v1495
    %v1544 = vmul.f32 %v1421, %v1531
    %v1545 = vmul.f32 %v1422, %v1496
    %v1546 = vmul.f32 %v1423, %v1532
    %v1547 = vmul.f32 %v1424, %v1497
    %v1548 = vmul.f32 %v1425, %v1533
    %v1549 = vmul.f32 %v1426, %v1498
    %v1550 = vmul.f32 %v1427, %v1534
    %v1559 = vcombine.low %v1543, %v1545
    %v1560 = vcombine.high %v1543, %v1545
    %v1561 = vcombine.low %v1547, %v1549
    %v1562 = vcombine.high %v1547, %v1549
    %v1564 = vunpack.c.l.s4 1983009808
    %v1565 = vunpack.c.0.s8 %v1564
    %v1566 = vlaneseq
    %v1567 = vshrl.u32 %v1566, 7
    %v1568 = vsub.s32 %v1565, %v1567
    %v1569 = vrot.slane %v1559, %v1568
    %v1571 = vunpack.c.l.s4 1983009808
    %v1572 = vunpack.c.0.s8 %v1571
    %v1573 = vlaneseq
    %v1574 = vshrl.u32 %v1573, 7
    %v1575 = vsub.s32 %v1572, %v1574
    %v1576 = vrot.slane %v1560, %v1575
    %v1578 = vunpack.c.l.s4 1983009808
    %v1579 = vunpack.c.0.s8 %v1578
    %v1580 = vlaneseq
    %v1581 = vshrl.u32 %v1580, 7
    %v1582 = vsub.s32 %v1579, %v1581
    %v1583 = vrot.slane %v1561, %v1582
    %v1585 = vunpack.c.l.s4 1983009808
    %v1586 = vunpack.c.0.s8 %v1585
    %v1587 = vlaneseq
    %v1588 = vshrl.u32 %v1587, 7
    %v1589 = vsub.s32 %v1586, %v1588
    %v1590 = vrot.slane %v1562, %v1589
    %v1591 = vcombine.low %v1569, %v1583
    %v1592 = vcombine.high %v1569, %v1583
    %v1593 = vcombine.low %v1576, %v1590
    %v1594 = vcombine.high %v1576, %v1590
    %v1595 = vcombine.low %v1544, %v1546
    %v1596 = vcombine.high %v1544, %v1546
    %v1597 = vcombine.low %v1548, %v1550
    %v1598 = vcombine.high %v1548, %v1550
    %v1600 = vunpack.c.l.s4 1983009808
    %v1601 = vunpack.c.0.s8 %v1600
    %v1602 = vlaneseq
    %v1603 = vshrl.u32 %v1602, 7
    %v1604 = vsub.s32 %v1601, %v1603
    %v1605 = vrot.slane %v1595, %v1604
    %v1607 = vunpack.c.l.s4 1983009808
    %v1608 = vunpack.c.0.s8 %v1607
    %v1609 = vlaneseq
    %v1610 = vshrl.u32 %v1609, 7
    %v1611 = vsub.s32 %v1608, %v1610
    %v1612 = vrot.slane %v1596, %v1611
    %v1614 = vunpack.c.l.s4 1983009808
    %v1615 = vunpack.c.0.s8 %v1614
    %v1616 = vlaneseq
    %v1617 = vshrl.u32 %v1616, 7
    %v1618 = vsub.s32 %v1615, %v1617
    %v1619 = vrot.slane %v1597, %v1618
    %v1621 = vunpack.c.l.s4 1983009808
    %v1622 = vunpack.c.0.s8 %v1621
    %v1623 = vlaneseq
    %v1624 = vshrl.u32 %v1623, 7
    %v1625 = vsub.s32 %v1622, %v1624
    %v1626 = vrot.slane %v1598, %v1625
    %v1627 = vcombine.low %v1605, %v1619
    %v1628 = vcombine.high %v1605, %v1619
    %v1629 = vcombine.low %v1612, %v1626
    %v1630 = vcombine.high %v1612, %v1626
    %v1639 = vadd.f32 %v1591, %v1592
    %v1640 = vadd.f32 %v1639, %v1593
    %v1641 = vadd.f32 %v1640, %v1594
    %v1642 = vadd.f32 %v1641, %v1627
    %v1643 = vadd.f32 %v1642, %v1628
    %v1644 = vadd.f32 %v1643, %v1629
    %v1645 = vadd.f32 %v1644, %v1630
    %1646 = vadd.xlane.f32.xlu0 %v1645
    %v1647 = vpop.xlane.xlu0 %1646
    %v1648 = vadd.f32 %v1418, %v1647
    %s1649 = scalar_lea.vmem [#allocation3], 112
    %v1650 = vld [vmem:[%s1649] sm:$0xff]
    %v1651 = vld [vmem:[%s1649 + $0x8] sm:$0xff]
    %v1652 = vld [vmem:[%s1649 + $0xc0] sm:$0xff]
    %v1653 = vld [vmem:[%s1649 + $0xc8] sm:$0xff]
    %v1654 = vld [vmem:[%s1649 + $0x180] sm:$0xff]
    %v1655 = vld [vmem:[%s1649 + $0x188] sm:$0xff]
    %v1656 = vld [vmem:[%s1649 + $0x240] sm:$0xff]
    %v1657 = vld [vmem:[%s1649 + $0x248] sm:$0xff]
    %s1658 = scalar_lea.vmem [#allocation5], 56
    %v1659 = vld [vmem:[%s1658] sm:$0xff]
    %v1661 = vlaneseq
    %v1662 = vshrl.u32 %v1661, 7
    %v1663 = vsub.s32 0, %v1662
    %v1664 = vrot.slane %v1659, %v1663
    %v1665 = vlaneseq
    %v1666 = vshrl.u32 %v1665, 7
    %v1667 = vsub.s32 1, %v1666
    %v1668 = vrot.slane %v1659, %v1667
    %v1669 = vlaneseq
    %v1670 = vshrl.u32 %v1669, 7
    %v1671 = vsub.s32 2, %v1670
    %v1672 = vrot.slane %v1659, %v1671
    %v1673 = vlaneseq
    %v1674 = vshrl.u32 %v1673, 7
    %v1675 = vsub.s32 3, %v1674
    %v1676 = vrot.slane %v1659, %v1675
    %v1677 = vlaneseq
    %v1678 = vshrl.u32 %v1677, 7
    %v1679 = vsub.s32 4, %v1678
    %v1680 = vrot.slane %v1659, %v1679
    %v1681 = vlaneseq
    %v1682 = vshrl.u32 %v1681, 7
    %v1683 = vsub.s32 5, %v1682
    %v1684 = vrot.slane %v1659, %v1683
    %v1685 = vlaneseq
    %v1686 = vshrl.u32 %v1685, 7
    %v1687 = vsub.s32 6, %v1686
    %v1688 = vrot.slane %v1659, %v1687
    %v1689 = vlaneseq
    %v1690 = vshrl.u32 %v1689, 7
    %v1691 = vsub.s32 7, %v1690
    %v1692 = vrot.slane %v1659, %v1691
    %v1693 = vcombine.low %v1664, %v1668
    %v1694 = vcombine.high %v1664, %v1668
    %v1695 = vcombine.low %v1672, %v1676
    %v1696 = vcombine.high %v1672, %v1676
    %v1698 = vunpack.c.l.s4 1983009808
    %v1699 = vunpack.c.0.s8 %v1698
    %v1700 = vlaneseq
    %v1701 = vshrl.u32 %v1700, 7
    %v1702 = vsub.s32 %v1699, %v1701
    %v1703 = vrot.slane %v1693, %v1702
    %v1705 = vunpack.c.l.s4 1983009808
    %v1706 = vunpack.c.0.s8 %v1705
    %v1707 = vlaneseq
    %v1708 = vshrl.u32 %v1707, 7
    %v1709 = vsub.s32 %v1706, %v1708
    %v1710 = vrot.slane %v1694, %v1709
    %v1712 = vunpack.c.l.s4 1983009808
    %v1713 = vunpack.c.0.s8 %v1712
    %v1714 = vlaneseq
    %v1715 = vshrl.u32 %v1714, 7
    %v1716 = vsub.s32 %v1713, %v1715
    %v1717 = vrot.slane %v1695, %v1716
    %v1719 = vunpack.c.l.s4 1983009808
    %v1720 = vunpack.c.0.s8 %v1719
    %v1721 = vlaneseq
    %v1722 = vshrl.u32 %v1721, 7
    %v1723 = vsub.s32 %v1720, %v1722
    %v1724 = vrot.slane %v1696, %v1723
    %v1725 = vcombine.low %v1703, %v1717
    %v1726 = vcombine.high %v1703, %v1717
    %v1727 = vcombine.low %v1710, %v1724
    %v1728 = vcombine.high %v1710, %v1724
    %v1729 = vcombine.low %v1680, %v1684
    %v1730 = vcombine.high %v1680, %v1684
    %v1731 = vcombine.low %v1688, %v1692
    %v1732 = vcombine.high %v1688, %v1692
    %v1734 = vunpack.c.l.s4 1983009808
    %v1735 = vunpack.c.0.s8 %v1734
    %v1736 = vlaneseq
    %v1737 = vshrl.u32 %v1736, 7
    %v1738 = vsub.s32 %v1735, %v1737
    %v1739 = vrot.slane %v1729, %v1738
    %v1741 = vunpack.c.l.s4 1983009808
    %v1742 = vunpack.c.0.s8 %v1741
    %v1743 = vlaneseq
    %v1744 = vshrl.u32 %v1743, 7
    %v1745 = vsub.s32 %v1742, %v1744
    %v1746 = vrot.slane %v1730, %v1745
    %v1748 = vunpack.c.l.s4 1983009808
    %v1749 = vunpack.c.0.s8 %v1748
    %v1750 = vlaneseq
    %v1751 = vshrl.u32 %v1750, 7
    %v1752 = vsub.s32 %v1749, %v1751
    %v1753 = vrot.slane %v1731, %v1752
    %v1755 = vunpack.c.l.s4 1983009808
    %v1756 = vunpack.c.0.s8 %v1755
    %v1757 = vlaneseq
    %v1758 = vshrl.u32 %v1757, 7
    %v1759 = vsub.s32 %v1756, %v1758
    %v1760 = vrot.slane %v1732, %v1759
    %v1761 = vcombine.low %v1739, %v1753
    %v1762 = vcombine.high %v1739, %v1753
    %v1763 = vcombine.low %v1746, %v1760
    %v1764 = vcombine.high %v1746, %v1760
    %v1773 = vmul.f32 %v1650, %v1725
    %v1774 = vmul.f32 %v1651, %v1761
    %v1775 = vmul.f32 %v1652, %v1726
    %v1776 = vmul.f32 %v1653, %v1762
    %v1777 = vmul.f32 %v1654, %v1727
    %v1778 = vmul.f32 %v1655, %v1763
    %v1779 = vmul.f32 %v1656, %v1728
    %v1780 = vmul.f32 %v1657, %v1764
    %v1789 = vcombine.low %v1773, %v1775
    %v1790 = vcombine.high %v1773, %v1775
    %v1791 = vcombine.low %v1777, %v1779
    %v1792 = vcombine.high %v1777, %v1779
    %v1794 = vunpack.c.l.s4 1983009808
    %v1795 = vunpack.c.0.s8 %v1794
    %v1796 = vlaneseq
    %v1797 = vshrl.u32 %v1796, 7
    %v1798 = vsub.s32 %v1795, %v1797
    %v1799 = vrot.slane %v1789, %v1798
    %v1801 = vunpack.c.l.s4 1983009808
    %v1802 = vunpack.c.0.s8 %v1801
    %v1803 = vlaneseq
    %v1804 = vshrl.u32 %v1803, 7
    %v1805 = vsub.s32 %v1802, %v1804
    %v1806 = vrot.slane %v1790, %v1805
    %v1808 = vunpack.c.l.s4 1983009808
    %v1809 = vunpack.c.0.s8 %v1808
    %v1810 = vlaneseq
    %v1811 = vshrl.u32 %v1810, 7
    %v1812 = vsub.s32 %v1809, %v1811
    %v1813 = vrot.slane %v1791, %v1812
    %v1815 = vunpack.c.l.s4 1983009808
    %v1816 = vunpack.c.0.s8 %v1815
    %v1817 = vlaneseq
    %v1818 = vshrl.u32 %v1817, 7
    %v1819 = vsub.s32 %v1816, %v1818
    %v1820 = vrot.slane %v1792, %v1819
    %v1821 = vcombine.low %v1799, %v1813
    %v1822 = vcombine.high %v1799, %v1813
    %v1823 = vcombine.low %v1806, %v1820
    %v1824 = vcombine.high %v1806, %v1820
    %v1825 = vcombine.low %v1774, %v1776
    %v1826 = vcombine.high %v1774, %v1776
    %v1827 = vcombine.low %v1778, %v1780
    %v1828 = vcombine.high %v1778, %v1780
    %v1830 = vunpack.c.l.s4 1983009808
    %v1831 = vunpack.c.0.s8 %v1830
    %v1832 = vlaneseq
    %v1833 = vshrl.u32 %v1832, 7
    %v1834 = vsub.s32 %v1831, %v1833
    %v1835 = vrot.slane %v1825, %v1834
    %v1837 = vunpack.c.l.s4 1983009808
    %v1838 = vunpack.c.0.s8 %v1837
    %v1839 = vlaneseq
    %v1840 = vshrl.u32 %v1839, 7
    %v1841 = vsub.s32 %v1838, %v1840
    %v1842 = vrot.slane %v1826, %v1841
    %v1844 = vunpack.c.l.s4 1983009808
    %v1845 = vunpack.c.0.s8 %v1844
    %v1846 = vlaneseq
    %v1847 = vshrl.u32 %v1846, 7
    %v1848 = vsub.s32 %v1845, %v1847
    %v1849 = vrot.slane %v1827, %v1848
    %v1851 = vunpack.c.l.s4 1983009808
    %v1852 = vunpack.c.0.s8 %v1851
    %v1853 = vlaneseq
    %v1854 = vshrl.u32 %v1853, 7
    %v1855 = vsub.s32 %v1852, %v1854
    %v1856 = vrot.slane %v1828, %v1855
    %v1857 = vcombine.low %v1835, %v1849
    %v1858 = vcombine.high %v1835, %v1849
    %v1859 = vcombine.low %v1842, %v1856
    %v1860 = vcombine.high %v1842, %v1856
    %v1869 = vadd.f32 %v1821, %v1822
    %v1870 = vadd.f32 %v1869, %v1823
    %v1871 = vadd.f32 %v1870, %v1824
    %v1872 = vadd.f32 %v1871, %v1857
    %v1873 = vadd.f32 %v1872, %v1858
    %v1874 = vadd.f32 %v1873, %v1859
    %v1875 = vadd.f32 %v1874, %v1860
    %1876 = vadd.xlane.f32.xlu0 %v1875
    %v1877 = vpop.xlane.xlu0 %1876
    %v1878 = vadd.f32 %v1648, %v1877
    %s1879 = scalar_lea.vmem [#allocation3], 128
    %v1880 = vld [vmem:[%s1879] sm:$0xff]
    %v1881 = vld [vmem:[%s1879 + $0x8] sm:$0xff]
    %v1882 = vld [vmem:[%s1879 + $0xc0] sm:$0xff]
    %v1883 = vld [vmem:[%s1879 + $0xc8] sm:$0xff]
    %v1884 = vld [vmem:[%s1879 + $0x180] sm:$0xff]
    %v1885 = vld [vmem:[%s1879 + $0x188] sm:$0xff]
    %v1886 = vld [vmem:[%s1879 + $0x240] sm:$0xff]
    %v1887 = vld [vmem:[%s1879 + $0x248] sm:$0xff]
    %s1888 = scalar_lea.vmem [#allocation5], 64
    %v1889 = vld [vmem:[%s1888] sm:$0xff]
    %v1891 = vlaneseq
    %v1892 = vshrl.u32 %v1891, 7
    %v1893 = vsub.s32 0, %v1892
    %v1894 = vrot.slane %v1889, %v1893
    %v1895 = vlaneseq
    %v1896 = vshrl.u32 %v1895, 7
    %v1897 = vsub.s32 1, %v1896
    %v1898 = vrot.slane %v1889, %v1897
    %v1899 = vlaneseq
    %v1900 = vshrl.u32 %v1899, 7
    %v1901 = vsub.s32 2, %v1900
    %v1902 = vrot.slane %v1889, %v1901
    %v1903 = vlaneseq
    %v1904 = vshrl.u32 %v1903, 7
    %v1905 = vsub.s32 3, %v1904
    %v1906 = vrot.slane %v1889, %v1905
    %v1907 = vlaneseq
    %v1908 = vshrl.u32 %v1907, 7
    %v1909 = vsub.s32 4, %v1908
    %v1910 = vrot.slane %v1889, %v1909
    %v1911 = vlaneseq
    %v1912 = vshrl.u32 %v1911, 7
    %v1913 = vsub.s32 5, %v1912
    %v1914 = vrot.slane %v1889, %v1913
    %v1915 = vlaneseq
    %v1916 = vshrl.u32 %v1915, 7
    %v1917 = vsub.s32 6, %v1916
    %v1918 = vrot.slane %v1889, %v1917
    %v1919 = vlaneseq
    %v1920 = vshrl.u32 %v1919, 7
    %v1921 = vsub.s32 7, %v1920
    %v1922 = vrot.slane %v1889, %v1921
    %v1923 = vcombine.low %v1894, %v1898
    %v1924 = vcombine.high %v1894, %v1898
    %v1925 = vcombine.low %v1902, %v1906
    %v1926 = vcombine.high %v1902, %v1906
    %v1928 = vunpack.c.l.s4 1983009808
    %v1929 = vunpack.c.0.s8 %v1928
    %v1930 = vlaneseq
    %v1931 = vshrl.u32 %v1930, 7
    %v1932 = vsub.s32 %v1929, %v1931
    %v1933 = vrot.slane %v1923, %v1932
    %v1935 = vunpack.c.l.s4 1983009808
    %v1936 = vunpack.c.0.s8 %v1935
    %v1937 = vlaneseq
    %v1938 = vshrl.u32 %v1937, 7
    %v1939 = vsub.s32 %v1936, %v1938
    %v1940 = vrot.slane %v1924, %v1939
    %v1942 = vunpack.c.l.s4 1983009808
    %v1943 = vunpack.c.0.s8 %v1942
    %v1944 = vlaneseq
    %v1945 = vshrl.u32 %v1944, 7
    %v1946 = vsub.s32 %v1943, %v1945
    %v1947 = vrot.slane %v1925, %v1946
    %v1949 = vunpack.c.l.s4 1983009808
    %v1950 = vunpack.c.0.s8 %v1949
    %v1951 = vlaneseq
    %v1952 = vshrl.u32 %v1951, 7
    %v1953 = vsub.s32 %v1950, %v1952
    %v1954 = vrot.slane %v1926, %v1953
    %v1955 = vcombine.low %v1933, %v1947
    %v1956 = vcombine.high %v1933, %v1947
    %v1957 = vcombine.low %v1940, %v1954
    %v1958 = vcombine.high %v1940, %v1954
    %v1959 = vcombine.low %v1910, %v1914
    %v1960 = vcombine.high %v1910, %v1914
    %v1961 = vcombine.low %v1918, %v1922
    %v1962 = vcombine.high %v1918, %v1922
    %v1964 = vunpack.c.l.s4 1983009808
    %v1965 = vunpack.c.0.s8 %v1964
    %v1966 = vlaneseq
    %v1967 = vshrl.u32 %v1966, 7
    %v1968 = vsub.s32 %v1965, %v1967
    %v1969 = vrot.slane %v1959, %v1968
    %v1971 = vunpack.c.l.s4 1983009808
    %v1972 = vunpack.c.0.s8 %v1971
    %v1973 = vlaneseq
    %v1974 = vshrl.u32 %v1973, 7
    %v1975 = vsub.s32 %v1972, %v1974
    %v1976 = vrot.slane %v1960, %v1975
    %v1978 = vunpack.c.l.s4 1983009808
    %v1979 = vunpack.c.0.s8 %v1978
    %v1980 = vlaneseq
    %v1981 = vshrl.u32 %v1980, 7
    %v1982 = vsub.s32 %v1979, %v1981
    %v1983 = vrot.slane %v1961, %v1982
    %v1985 = vunpack.c.l.s4 1983009808
    %v1986 = vunpack.c.0.s8 %v1985
    %v1987 = vlaneseq
    %v1988 = vshrl.u32 %v1987, 7
    %v1989 = vsub.s32 %v1986, %v1988
    %v1990 = vrot.slane %v1962, %v1989
    %v1991 = vcombine.low %v1969, %v1983
    %v1992 = vcombine.high %v1969, %v1983
    %v1993 = vcombine.low %v1976, %v1990
    %v1994 = vcombine.high %v1976, %v1990
    %v2003 = vmul.f32 %v1880, %v1955
    %v2004 = vmul.f32 %v1881, %v1991
    %v2005 = vmul.f32 %v1882, %v1956
    %v2006 = vmul.f32 %v1883, %v1992
    %v2007 = vmul.f32 %v1884, %v1957
    %v2008 = vmul.f32 %v1885, %v1993
    %v2009 = vmul.f32 %v1886, %v1958
    %v2010 = vmul.f32 %v1887, %v1994
    %v2019 = vcombine.low %v2003, %v2005
    %v2020 = vcombine.high %v2003, %v2005
    %v2021 = vcombine.low %v2007, %v2009
    %v2022 = vcombine.high %v2007, %v2009
    %v2024 = vunpack.c.l.s4 1983009808
    %v2025 = vunpack.c.0.s8 %v2024
    %v2026 = vlaneseq
    %v2027 = vshrl.u32 %v2026, 7
    %v2028 = vsub.s32 %v2025, %v2027
    %v2029 = vrot.slane %v2019, %v2028
    %v2031 = vunpack.c.l.s4 1983009808
    %v2032 = vunpack.c.0.s8 %v2031
    %v2033 = vlaneseq
    %v2034 = vshrl.u32 %v2033, 7
    %v2035 = vsub.s32 %v2032, %v2034
    %v2036 = vrot.slane %v2020, %v2035
    %v2038 = vunpack.c.l.s4 1983009808
    %v2039 = vunpack.c.0.s8 %v2038
    %v2040 = vlaneseq
    %v2041 = vshrl.u32 %v2040, 7
    %v2042 = vsub.s32 %v2039, %v2041
    %v2043 = vrot.slane %v2021, %v2042
    %v2045 = vunpack.c.l.s4 1983009808
    %v2046 = vunpack.c.0.s8 %v2045
    %v2047 = vlaneseq
    %v2048 = vshrl.u32 %v2047, 7
    %v2049 = vsub.s32 %v2046, %v2048
    %v2050 = vrot.slane %v2022, %v2049
    %v2051 = vcombine.low %v2029, %v2043
    %v2052 = vcombine.high %v2029, %v2043
    %v2053 = vcombine.low %v2036, %v2050
    %v2054 = vcombine.high %v2036, %v2050
    %v2055 = vcombine.low %v2004, %v2006
    %v2056 = vcombine.high %v2004, %v2006
    %v2057 = vcombine.low %v2008, %v2010
    %v2058 = vcombine.high %v2008, %v2010
    %v2060 = vunpack.c.l.s4 1983009808
    %v2061 = vunpack.c.0.s8 %v2060
    %v2062 = vlaneseq
    %v2063 = vshrl.u32 %v2062, 7
    %v2064 = vsub.s32 %v2061, %v2063
    %v2065 = vrot.slane %v2055, %v2064
    %v2067 = vunpack.c.l.s4 1983009808
    %v2068 = vunpack.c.0.s8 %v2067
    %v2069 = vlaneseq
    %v2070 = vshrl.u32 %v2069, 7
    %v2071 = vsub.s32 %v2068, %v2070
    %v2072 = vrot.slane %v2056, %v2071
    %v2074 = vunpack.c.l.s4 1983009808
    %v2075 = vunpack.c.0.s8 %v2074
    %v2076 = vlaneseq
    %v2077 = vshrl.u32 %v2076, 7
    %v2078 = vsub.s32 %v2075, %v2077
    %v2079 = vrot.slane %v2057, %v2078
    %v2081 = vunpack.c.l.s4 1983009808
    %v2082 = vunpack.c.0.s8 %v2081
    %v2083 = vlaneseq
    %v2084 = vshrl.u32 %v2083, 7
    %v2085 = vsub.s32 %v2082, %v2084
    %v2086 = vrot.slane %v2058, %v2085
    %v2087 = vcombine.low %v2065, %v2079
    %v2088 = vcombine.high %v2065, %v2079
    %v2089 = vcombine.low %v2072, %v2086
    %v2090 = vcombine.high %v2072, %v2086
    %v2099 = vadd.f32 %v2051, %v2052
    %v2100 = vadd.f32 %v2099, %v2053
    %v2101 = vadd.f32 %v2100, %v2054
    %v2102 = vadd.f32 %v2101, %v2087
    %v2103 = vadd.f32 %v2102, %v2088
    %v2104 = vadd.f32 %v2103, %v2089
    %v2105 = vadd.f32 %v2104, %v2090
    %2106 = vadd.xlane.f32.xlu0 %v2105
    %v2107 = vpop.xlane.xlu0 %2106
    %v2108 = vadd.f32 %v1878, %v2107
    %s2109 = scalar_lea.vmem [#allocation3], 144
    %v2110 = vld [vmem:[%s2109] sm:$0xff]
    %v2111 = vld [vmem:[%s2109 + $0x8] sm:$0xff]
    %v2112 = vld [vmem:[%s2109 + $0xc0] sm:$0xff]
    %v2113 = vld [vmem:[%s2109 + $0xc8] sm:$0xff]
    %v2114 = vld [vmem:[%s2109 + $0x180] sm:$0xff]
    %v2115 = vld [vmem:[%s2109 + $0x188] sm:$0xff]
    %v2116 = vld [vmem:[%s2109 + $0x240] sm:$0xff]
    %v2117 = vld [vmem:[%s2109 + $0x248] sm:$0xff]
    %s2118 = scalar_lea.vmem [#allocation5], 72
    %v2119 = vld [vmem:[%s2118] sm:$0xff]
    %v2121 = vlaneseq
    %v2122 = vshrl.u32 %v2121, 7
    %v2123 = vsub.s32 0, %v2122
    %v2124 = vrot.slane %v2119, %v2123
    %v2125 = vlaneseq
    %v2126 = vshrl.u32 %v2125, 7
    %v2127 = vsub.s32 1, %v2126
    %v2128 = vrot.slane %v2119, %v2127
    %v2129 = vlaneseq
    %v2130 = vshrl.u32 %v2129, 7
    %v2131 = vsub.s32 2, %v2130
    %v2132 = vrot.slane %v2119, %v2131
    %v2133 = vlaneseq
    %v2134 = vshrl.u32 %v2133, 7
    %v2135 = vsub.s32 3, %v2134
    %v2136 = vrot.slane %v2119, %v2135
    %v2137 = vlaneseq
    %v2138 = vshrl.u32 %v2137, 7
    %v2139 = vsub.s32 4, %v2138
    %v2140 = vrot.slane %v2119, %v2139
    %v2141 = vlaneseq
    %v2142 = vshrl.u32 %v2141, 7
    %v2143 = vsub.s32 5, %v2142
    %v2144 = vrot.slane %v2119, %v2143
    %v2145 = vlaneseq
    %v2146 = vshrl.u32 %v2145, 7
    %v2147 = vsub.s32 6, %v2146
    %v2148 = vrot.slane %v2119, %v2147
    %v2149 = vlaneseq
    %v2150 = vshrl.u32 %v2149, 7
    %v2151 = vsub.s32 7, %v2150
    %v2152 = vrot.slane %v2119, %v2151
    %v2153 = vcombine.low %v2124, %v2128
    %v2154 = vcombine.high %v2124, %v2128
    %v2155 = vcombine.low %v2132, %v2136
    %v2156 = vcombine.high %v2132, %v2136
    %v2158 = vunpack.c.l.s4 1983009808
    %v2159 = vunpack.c.0.s8 %v2158
    %v2160 = vlaneseq
    %v2161 = vshrl.u32 %v2160, 7
    %v2162 = vsub.s32 %v2159, %v2161
    %v2163 = vrot.slane %v2153, %v2162
    %v2165 = vunpack.c.l.s4 1983009808
    %v2166 = vunpack.c.0.s8 %v2165
    %v2167 = vlaneseq
    %v2168 = vshrl.u32 %v2167, 7
    %v2169 = vsub.s32 %v2166, %v2168
    %v2170 = vrot.slane %v2154, %v2169
    %v2172 = vunpack.c.l.s4 1983009808
    %v2173 = vunpack.c.0.s8 %v2172
    %v2174 = vlaneseq
    %v2175 = vshrl.u32 %v2174, 7
    %v2176 = vsub.s32 %v2173, %v2175
    %v2177 = vrot.slane %v2155, %v2176
    %v2179 = vunpack.c.l.s4 1983009808
    %v2180 = vunpack.c.0.s8 %v2179
    %v2181 = vlaneseq
    %v2182 = vshrl.u32 %v2181, 7
    %v2183 = vsub.s32 %v2180, %v2182
    %v2184 = vrot.slane %v2156, %v2183
    %v2185 = vcombine.low %v2163, %v2177
    %v2186 = vcombine.high %v2163, %v2177
    %v2187 = vcombine.low %v2170, %v2184
    %v2188 = vcombine.high %v2170, %v2184
    %v2189 = vcombine.low %v2140, %v2144
    %v2190 = vcombine.high %v2140, %v2144
    %v2191 = vcombine.low %v2148, %v2152
    %v2192 = vcombine.high %v2148, %v2152
    %v2194 = vunpack.c.l.s4 1983009808
    %v2195 = vunpack.c.0.s8 %v2194
    %v2196 = vlaneseq
    %v2197 = vshrl.u32 %v2196, 7
    %v2198 = vsub.s32 %v2195, %v2197
    %v2199 = vrot.slane %v2189, %v2198
    %v2201 = vunpack.c.l.s4 1983009808
    %v2202 = vunpack.c.0.s8 %v2201
    %v2203 = vlaneseq
    %v2204 = vshrl.u32 %v2203, 7
    %v2205 = vsub.s32 %v2202, %v2204
    %v2206 = vrot.slane %v2190, %v2205
    %v2208 = vunpack.c.l.s4 1983009808
    %v2209 = vunpack.c.0.s8 %v2208
    %v2210 = vlaneseq
    %v2211 = vshrl.u32 %v2210, 7
    %v2212 = vsub.s32 %v2209, %v2211
    %v2213 = vrot.slane %v2191, %v2212
    %v2215 = vunpack.c.l.s4 1983009808
    %v2216 = vunpack.c.0.s8 %v2215
    %v2217 = vlaneseq
    %v2218 = vshrl.u32 %v2217, 7
    %v2219 = vsub.s32 %v2216, %v2218
    %v2220 = vrot.slane %v2192, %v2219
    %v2221 = vcombine.low %v2199, %v2213
    %v2222 = vcombine.high %v2199, %v2213
    %v2223 = vcombine.low %v2206, %v2220
    %v2224 = vcombine.high %v2206, %v2220
    %v2233 = vmul.f32 %v2110, %v2185
    %v2234 = vmul.f32 %v2111, %v2221
    %v2235 = vmul.f32 %v2112, %v2186
    %v2236 = vmul.f32 %v2113, %v2222
    %v2237 = vmul.f32 %v2114, %v2187
    %v2238 = vmul.f32 %v2115, %v2223
    %v2239 = vmul.f32 %v2116, %v2188
    %v2240 = vmul.f32 %v2117, %v2224
    %v2249 = vcombine.low %v2233, %v2235
    %v2250 = vcombine.high %v2233, %v2235
    %v2251 = vcombine.low %v2237, %v2239
    %v2252 = vcombine.high %v2237, %v2239
    %v2254 = vunpack.c.l.s4 1983009808
    %v2255 = vunpack.c.0.s8 %v2254
    %v2256 = vlaneseq
    %v2257 = vshrl.u32 %v2256, 7
    %v2258 = vsub.s32 %v2255, %v2257
    %v2259 = vrot.slane %v2249, %v2258
    %v2261 = vunpack.c.l.s4 1983009808
    %v2262 = vunpack.c.0.s8 %v2261
    %v2263 = vlaneseq
    %v2264 = vshrl.u32 %v2263, 7
    %v2265 = vsub.s32 %v2262, %v2264
    %v2266 = vrot.slane %v2250, %v2265
    %v2268 = vunpack.c.l.s4 1983009808
    %v2269 = vunpack.c.0.s8 %v2268
    %v2270 = vlaneseq
    %v2271 = vshrl.u32 %v2270, 7
    %v2272 = vsub.s32 %v2269, %v2271
    %v2273 = vrot.slane %v2251, %v2272
    %v2275 = vunpack.c.l.s4 1983009808
    %v2276 = vunpack.c.0.s8 %v2275
    %v2277 = vlaneseq
    %v2278 = vshrl.u32 %v2277, 7
    %v2279 = vsub.s32 %v2276, %v2278
    %v2280 = vrot.slane %v2252, %v2279
    %v2281 = vcombine.low %v2259, %v2273
    %v2282 = vcombine.high %v2259, %v2273
    %v2283 = vcombine.low %v2266, %v2280
    %v2284 = vcombine.high %v2266, %v2280
    %v2285 = vcombine.low %v2234, %v2236
    %v2286 = vcombine.high %v2234, %v2236
    %v2287 = vcombine.low %v2238, %v2240
    %v2288 = vcombine.high %v2238, %v2240
    %v2290 = vunpack.c.l.s4 1983009808
    %v2291 = vunpack.c.0.s8 %v2290
    %v2292 = vlaneseq
    %v2293 = vshrl.u32 %v2292, 7
    %v2294 = vsub.s32 %v2291, %v2293
    %v2295 = vrot.slane %v2285, %v2294
    %v2297 = vunpack.c.l.s4 1983009808
    %v2298 = vunpack.c.0.s8 %v2297
    %v2299 = vlaneseq
    %v2300 = vshrl.u32 %v2299, 7
    %v2301 = vsub.s32 %v2298, %v2300
    %v2302 = vrot.slane %v2286, %v2301
    %v2304 = vunpack.c.l.s4 1983009808
    %v2305 = vunpack.c.0.s8 %v2304
    %v2306 = vlaneseq
    %v2307 = vshrl.u32 %v2306, 7
    %v2308 = vsub.s32 %v2305, %v2307
    %v2309 = vrot.slane %v2287, %v2308
    %v2311 = vunpack.c.l.s4 1983009808
    %v2312 = vunpack.c.0.s8 %v2311
    %v2313 = vlaneseq
    %v2314 = vshrl.u32 %v2313, 7
    %v2315 = vsub.s32 %v2312, %v2314
    %v2316 = vrot.slane %v2288, %v2315
    %v2317 = vcombine.low %v2295, %v2309
    %v2318 = vcombine.high %v2295, %v2309
    %v2319 = vcombine.low %v2302, %v2316
    %v2320 = vcombine.high %v2302, %v2316
    %v2329 = vadd.f32 %v2281, %v2282
    %v2330 = vadd.f32 %v2329, %v2283
    %v2331 = vadd.f32 %v2330, %v2284
    %v2332 = vadd.f32 %v2331, %v2317
    %v2333 = vadd.f32 %v2332, %v2318
    %v2334 = vadd.f32 %v2333, %v2319
    %v2335 = vadd.f32 %v2334, %v2320
    %2336 = vadd.xlane.f32.xlu0 %v2335
    %v2337 = vpop.xlane.xlu0 %2336
    %v2338 = vadd.f32 %v2108, %v2337
    %s2339 = scalar_lea.vmem [#allocation3], 160
    %v2340 = vld [vmem:[%s2339] sm:$0xff]
    %v2341 = vld [vmem:[%s2339 + $0x8] sm:$0xff]
    %v2342 = vld [vmem:[%s2339 + $0xc0] sm:$0xff]
    %v2343 = vld [vmem:[%s2339 + $0xc8] sm:$0xff]
    %v2344 = vld [vmem:[%s2339 + $0x180] sm:$0xff]
    %v2345 = vld [vmem:[%s2339 + $0x188] sm:$0xff]
    %v2346 = vld [vmem:[%s2339 + $0x240] sm:$0xff]
    %v2347 = vld [vmem:[%s2339 + $0x248] sm:$0xff]
    %s2348 = scalar_lea.vmem [#allocation5], 80
    %v2349 = vld [vmem:[%s2348] sm:$0xff]
    %v2351 = vlaneseq
    %v2352 = vshrl.u32 %v2351, 7
    %v2353 = vsub.s32 0, %v2352
    %v2354 = vrot.slane %v2349, %v2353
    %v2355 = vlaneseq
    %v2356 = vshrl.u32 %v2355, 7
    %v2357 = vsub.s32 1, %v2356
    %v2358 = vrot.slane %v2349, %v2357
    %v2359 = vlaneseq
    %v2360 = vshrl.u32 %v2359, 7
    %v2361 = vsub.s32 2, %v2360
    %v2362 = vrot.slane %v2349, %v2361
    %v2363 = vlaneseq
    %v2364 = vshrl.u32 %v2363, 7
    %v2365 = vsub.s32 3, %v2364
    %v2366 = vrot.slane %v2349, %v2365
    %v2367 = vlaneseq
    %v2368 = vshrl.u32 %v2367, 7
    %v2369 = vsub.s32 4, %v2368
    %v2370 = vrot.slane %v2349, %v2369
    %v2371 = vlaneseq
    %v2372 = vshrl.u32 %v2371, 7
    %v2373 = vsub.s32 5, %v2372
    %v2374 = vrot.slane %v2349, %v2373
    %v2375 = vlaneseq
    %v2376 = vshrl.u32 %v2375, 7
    %v2377 = vsub.s32 6, %v2376
    %v2378 = vrot.slane %v2349, %v2377
    %v2379 = vlaneseq
    %v2380 = vshrl.u32 %v2379, 7
    %v2381 = vsub.s32 7, %v2380
    %v2382 = vrot.slane %v2349, %v2381
    %v2383 = vcombine.low %v2354, %v2358
    %v2384 = vcombine.high %v2354, %v2358
    %v2385 = vcombine.low %v2362, %v2366
    %v2386 = vcombine.high %v2362, %v2366
    %v2388 = vunpack.c.l.s4 1983009808
    %v2389 = vunpack.c.0.s8 %v2388
    %v2390 = vlaneseq
    %v2391 = vshrl.u32 %v2390, 7
    %v2392 = vsub.s32 %v2389, %v2391
    %v2393 = vrot.slane %v2383, %v2392
    %v2395 = vunpack.c.l.s4 1983009808
    %v2396 = vunpack.c.0.s8 %v2395
    %v2397 = vlaneseq
    %v2398 = vshrl.u32 %v2397, 7
    %v2399 = vsub.s32 %v2396, %v2398
    %v2400 = vrot.slane %v2384, %v2399
    %v2402 = vunpack.c.l.s4 1983009808
    %v2403 = vunpack.c.0.s8 %v2402
    %v2404 = vlaneseq
    %v2405 = vshrl.u32 %v2404, 7
    %v2406 = vsub.s32 %v2403, %v2405
    %v2407 = vrot.slane %v2385, %v2406
    %v2409 = vunpack.c.l.s4 1983009808
    %v2410 = vunpack.c.0.s8 %v2409
    %v2411 = vlaneseq
    %v2412 = vshrl.u32 %v2411, 7
    %v2413 = vsub.s32 %v2410, %v2412
    %v2414 = vrot.slane %v2386, %v2413
    %v2415 = vcombine.low %v2393, %v2407
    %v2416 = vcombine.high %v2393, %v2407
    %v2417 = vcombine.low %v2400, %v2414
    %v2418 = vcombine.high %v2400, %v2414
    %v2419 = vcombine.low %v2370, %v2374
    %v2420 = vcombine.high %v2370, %v2374
    %v2421 = vcombine.low %v2378, %v2382
    %v2422 = vcombine.high %v2378, %v2382
    %v2424 = vunpack.c.l.s4 1983009808
    %v2425 = vunpack.c.0.s8 %v2424
    %v2426 = vlaneseq
    %v2427 = vshrl.u32 %v2426, 7
    %v2428 = vsub.s32 %v2425, %v2427
    %v2429 = vrot.slane %v2419, %v2428
    %v2431 = vunpack.c.l.s4 1983009808
    %v2432 = vunpack.c.0.s8 %v2431
    %v2433 = vlaneseq
    %v2434 = vshrl.u32 %v2433, 7
    %v2435 = vsub.s32 %v2432, %v2434
    %v2436 = vrot.slane %v2420, %v2435
    %v2438 = vunpack.c.l.s4 1983009808
    %v2439 = vunpack.c.0.s8 %v2438
    %v2440 = vlaneseq
    %v2441 = vshrl.u32 %v2440, 7
    %v2442 = vsub.s32 %v2439, %v2441
    %v2443 = vrot.slane %v2421, %v2442
    %v2445 = vunpack.c.l.s4 1983009808
    %v2446 = vunpack.c.0.s8 %v2445
    %v2447 = vlaneseq
    %v2448 = vshrl.u32 %v2447, 7
    %v2449 = vsub.s32 %v2446, %v2448
    %v2450 = vrot.slane %v2422, %v2449
    %v2451 = vcombine.low %v2429, %v2443
    %v2452 = vcombine.high %v2429, %v2443
    %v2453 = vcombine.low %v2436, %v2450
    %v2454 = vcombine.high %v2436, %v2450
    %v2463 = vmul.f32 %v2340, %v2415
    %v2464 = vmul.f32 %v2341, %v2451
    %v2465 = vmul.f32 %v2342, %v2416
    %v2466 = vmul.f32 %v2343, %v2452
    %v2467 = vmul.f32 %v2344, %v2417
    %v2468 = vmul.f32 %v2345, %v2453
    %v2469 = vmul.f32 %v2346, %v2418
    %v2470 = vmul.f32 %v2347, %v2454
    %v2479 = vcombine.low %v2463, %v2465
    %v2480 = vcombine.high %v2463, %v2465
    %v2481 = vcombine.low %v2467, %v2469
    %v2482 = vcombine.high %v2467, %v2469
    %v2484 = vunpack.c.l.s4 1983009808
    %v2485 = vunpack.c.0.s8 %v2484
    %v2486 = vlaneseq
    %v2487 = vshrl.u32 %v2486, 7
    %v2488 = vsub.s32 %v2485, %v2487
    %v2489 = vrot.slane %v2479, %v2488
    %v2491 = vunpack.c.l.s4 1983009808
    %v2492 = vunpack.c.0.s8 %v2491
    %v2493 = vlaneseq
    %v2494 = vshrl.u32 %v2493, 7
    %v2495 = vsub.s32 %v2492, %v2494
    %v2496 = vrot.slane %v2480, %v2495
    %v2498 = vunpack.c.l.s4 1983009808
    %v2499 = vunpack.c.0.s8 %v2498
    %v2500 = vlaneseq
    %v2501 = vshrl.u32 %v2500, 7
    %v2502 = vsub.s32 %v2499, %v2501
    %v2503 = vrot.slane %v2481, %v2502
    %v2505 = vunpack.c.l.s4 1983009808
    %v2506 = vunpack.c.0.s8 %v2505
    %v2507 = vlaneseq
    %v2508 = vshrl.u32 %v2507, 7
    %v2509 = vsub.s32 %v2506, %v2508
    %v2510 = vrot.slane %v2482, %v2509
    %v2511 = vcombine.low %v2489, %v2503
    %v2512 = vcombine.high %v2489, %v2503
    %v2513 = vcombine.low %v2496, %v2510
    %v2514 = vcombine.high %v2496, %v2510
    %v2515 = vcombine.low %v2464, %v2466
    %v2516 = vcombine.high %v2464, %v2466
    %v2517 = vcombine.low %v2468, %v2470
    %v2518 = vcombine.high %v2468, %v2470
    %v2520 = vunpack.c.l.s4 1983009808
    %v2521 = vunpack.c.0.s8 %v2520
    %v2522 = vlaneseq
    %v2523 = vshrl.u32 %v2522, 7
    %v2524 = vsub.s32 %v2521, %v2523
    %v2525 = vrot.slane %v2515, %v2524
    %v2527 = vunpack.c.l.s4 1983009808
    %v2528 = vunpack.c.0.s8 %v2527
    %v2529 = vlaneseq
    %v2530 = vshrl.u32 %v2529, 7
    %v2531 = vsub.s32 %v2528, %v2530
    %v2532 = vrot.slane %v2516, %v2531
    %v2534 = vunpack.c.l.s4 1983009808
    %v2535 = vunpack.c.0.s8 %v2534
    %v2536 = vlaneseq
    %v2537 = vshrl.u32 %v2536, 7
    %v2538 = vsub.s32 %v2535, %v2537
    %v2539 = vrot.slane %v2517, %v2538
    %v2541 = vunpack.c.l.s4 1983009808
    %v2542 = vunpack.c.0.s8 %v2541
    %v2543 = vlaneseq
    %v2544 = vshrl.u32 %v2543, 7
    %v2545 = vsub.s32 %v2542, %v2544
    %v2546 = vrot.slane %v2518, %v2545
    %v2547 = vcombine.low %v2525, %v2539
    %v2548 = vcombine.high %v2525, %v2539
    %v2549 = vcombine.low %v2532, %v2546
    %v2550 = vcombine.high %v2532, %v2546
    %v2559 = vadd.f32 %v2511, %v2512
    %v2560 = vadd.f32 %v2559, %v2513
    %v2561 = vadd.f32 %v2560, %v2514
    %v2562 = vadd.f32 %v2561, %v2547
    %v2563 = vadd.f32 %v2562, %v2548
    %v2564 = vadd.f32 %v2563, %v2549
    %v2565 = vadd.f32 %v2564, %v2550
    %2566 = vadd.xlane.f32.xlu0 %v2565
    %v2567 = vpop.xlane.xlu0 %2566
    %v2568 = vadd.f32 %v2338, %v2567
    %s2569 = scalar_lea.vmem [#allocation3], 176
    %v2570 = vld [vmem:[%s2569] sm:$0xff]
    %v2571 = vld [vmem:[%s2569 + $0x8] sm:$0xff]
    %v2572 = vld [vmem:[%s2569 + $0xc0] sm:$0xff]
    %v2573 = vld [vmem:[%s2569 + $0xc8] sm:$0xff]
    %v2574 = vld [vmem:[%s2569 + $0x180] sm:$0xff]
    %v2575 = vld [vmem:[%s2569 + $0x188] sm:$0xff]
    %v2576 = vld [vmem:[%s2569 + $0x240] sm:$0xff]
    %v2577 = vld [vmem:[%s2569 + $0x248] sm:$0xff]
    %s2578 = scalar_lea.vmem [#allocation5], 88
    %v2579 = vld [vmem:[%s2578] sm:$0xff]
    %v2581 = vlaneseq
    %v2582 = vshrl.u32 %v2581, 7
    %v2583 = vsub.s32 0, %v2582
    %v2584 = vrot.slane %v2579, %v2583
    %v2585 = vlaneseq
    %v2586 = vshrl.u32 %v2585, 7
    %v2587 = vsub.s32 1, %v2586
    %v2588 = vrot.slane %v2579, %v2587
    %v2589 = vlaneseq
    %v2590 = vshrl.u32 %v2589, 7
    %v2591 = vsub.s32 2, %v2590
    %v2592 = vrot.slane %v2579, %v2591
    %v2593 = vlaneseq
    %v2594 = vshrl.u32 %v2593, 7
    %v2595 = vsub.s32 3, %v2594
    %v2596 = vrot.slane %v2579, %v2595
    %v2597 = vlaneseq
    %v2598 = vshrl.u32 %v2597, 7
    %v2599 = vsub.s32 4, %v2598
    %v2600 = vrot.slane %v2579, %v2599
    %v2601 = vlaneseq
    %v2602 = vshrl.u32 %v2601, 7
    %v2603 = vsub.s32 5, %v2602
    %v2604 = vrot.slane %v2579, %v2603
    %v2605 = vlaneseq
    %v2606 = vshrl.u32 %v2605, 7
    %v2607 = vsub.s32 6, %v2606
    %v2608 = vrot.slane %v2579, %v2607
    %v2609 = vlaneseq
    %v2610 = vshrl.u32 %v2609, 7
    %v2611 = vsub.s32 7, %v2610
    %v2612 = vrot.slane %v2579, %v2611
    %v2613 = vcombine.low %v2584, %v2588
    %v2614 = vcombine.high %v2584, %v2588
    %v2615 = vcombine.low %v2592, %v2596
    %v2616 = vcombine.high %v2592, %v2596
    %v2618 = vunpack.c.l.s4 1983009808
    %v2619 = vunpack.c.0.s8 %v2618
    %v2620 = vlaneseq
    %v2621 = vshrl.u32 %v2620, 7
    %v2622 = vsub.s32 %v2619, %v2621
    %v2623 = vrot.slane %v2613, %v2622
    %v2625 = vunpack.c.l.s4 1983009808
    %v2626 = vunpack.c.0.s8 %v2625
    %v2627 = vlaneseq
    %v2628 = vshrl.u32 %v2627, 7
    %v2629 = vsub.s32 %v2626, %v2628
    %v2630 = vrot.slane %v2614, %v2629
    %v2632 = vunpack.c.l.s4 1983009808
    %v2633 = vunpack.c.0.s8 %v2632
    %v2634 = vlaneseq
    %v2635 = vshrl.u32 %v2634, 7
    %v2636 = vsub.s32 %v2633, %v2635
    %v2637 = vrot.slane %v2615, %v2636
    %v2639 = vunpack.c.l.s4 1983009808
    %v2640 = vunpack.c.0.s8 %v2639
    %v2641 = vlaneseq
    %v2642 = vshrl.u32 %v2641, 7
    %v2643 = vsub.s32 %v2640, %v2642
    %v2644 = vrot.slane %v2616, %v2643
    %v2645 = vcombine.low %v2623, %v2637
    %v2646 = vcombine.high %v2623, %v2637
    %v2647 = vcombine.low %v2630, %v2644
    %v2648 = vcombine.high %v2630, %v2644
    %v2649 = vcombine.low %v2600, %v2604
    %v2650 = vcombine.high %v2600, %v2604
    %v2651 = vcombine.low %v2608, %v2612
    %v2652 = vcombine.high %v2608, %v2612
    %v2654 = vunpack.c.l.s4 1983009808
    %v2655 = vunpack.c.0.s8 %v2654
    %v2656 = vlaneseq
    %v2657 = vshrl.u32 %v2656, 7
    %v2658 = vsub.s32 %v2655, %v2657
    %v2659 = vrot.slane %v2649, %v2658
    %v2661 = vunpack.c.l.s4 1983009808
    %v2662 = vunpack.c.0.s8 %v2661
    %v2663 = vlaneseq
    %v2664 = vshrl.u32 %v2663, 7
    %v2665 = vsub.s32 %v2662, %v2664
    %v2666 = vrot.slane %v2650, %v2665
    %v2668 = vunpack.c.l.s4 1983009808
    %v2669 = vunpack.c.0.s8 %v2668
    %v2670 = vlaneseq
    %v2671 = vshrl.u32 %v2670, 7
    %v2672 = vsub.s32 %v2669, %v2671
    %v2673 = vrot.slane %v2651, %v2672
    %v2675 = vunpack.c.l.s4 1983009808
    %v2676 = vunpack.c.0.s8 %v2675
    %v2677 = vlaneseq
    %v2678 = vshrl.u32 %v2677, 7
    %v2679 = vsub.s32 %v2676, %v2678
    %v2680 = vrot.slane %v2652, %v2679
    %v2681 = vcombine.low %v2659, %v2673
    %v2682 = vcombine.high %v2659, %v2673
    %v2683 = vcombine.low %v2666, %v2680
    %v2684 = vcombine.high %v2666, %v2680
    %v2693 = vmul.f32 %v2570, %v2645
    %v2694 = vmul.f32 %v2571, %v2681
    %v2695 = vmul.f32 %v2572, %v2646
    %v2696 = vmul.f32 %v2573, %v2682
    %v2697 = vmul.f32 %v2574, %v2647
    %v2698 = vmul.f32 %v2575, %v2683
    %v2699 = vmul.f32 %v2576, %v2648
    %v2700 = vmul.f32 %v2577, %v2684
    %v2709 = vcombine.low %v2693, %v2695
    %v2710 = vcombine.high %v2693, %v2695
    %v2711 = vcombine.low %v2697, %v2699
    %v2712 = vcombine.high %v2697, %v2699
    %v2714 = vunpack.c.l.s4 1983009808
    %v2715 = vunpack.c.0.s8 %v2714
    %v2716 = vlaneseq
    %v2717 = vshrl.u32 %v2716, 7
    %v2718 = vsub.s32 %v2715, %v2717
    %v2719 = vrot.slane %v2709, %v2718
    %v2721 = vunpack.c.l.s4 1983009808
    %v2722 = vunpack.c.0.s8 %v2721
    %v2723 = vlaneseq
    %v2724 = vshrl.u32 %v2723, 7
    %v2725 = vsub.s32 %v2722, %v2724
    %v2726 = vrot.slane %v2710, %v2725
    %v2728 = vunpack.c.l.s4 1983009808
    %v2729 = vunpack.c.0.s8 %v2728
    %v2730 = vlaneseq
    %v2731 = vshrl.u32 %v2730, 7
    %v2732 = vsub.s32 %v2729, %v2731
    %v2733 = vrot.slane %v2711, %v2732
    %v2735 = vunpack.c.l.s4 1983009808
    %v2736 = vunpack.c.0.s8 %v2735
    %v2737 = vlaneseq
    %v2738 = vshrl.u32 %v2737, 7
    %v2739 = vsub.s32 %v2736, %v2738
    %v2740 = vrot.slane %v2712, %v2739
    %v2741 = vcombine.low %v2719, %v2733
    %v2742 = vcombine.high %v2719, %v2733
    %v2743 = vcombine.low %v2726, %v2740
    %v2744 = vcombine.high %v2726, %v2740
    %v2745 = vcombine.low %v2694, %v2696
    %v2746 = vcombine.high %v2694, %v2696
    %v2747 = vcombine.low %v2698, %v2700
    %v2748 = vcombine.high %v2698, %v2700
    %v2750 = vunpack.c.l.s4 1983009808
    %v2751 = vunpack.c.0.s8 %v2750
    %v2752 = vlaneseq
    %v2753 = vshrl.u32 %v2752, 7
    %v2754 = vsub.s32 %v2751, %v2753
    %v2755 = vrot.slane %v2745, %v2754
    %v2757 = vunpack.c.l.s4 1983009808
    %v2758 = vunpack.c.0.s8 %v2757
    %v2759 = vlaneseq
    %v2760 = vshrl.u32 %v2759, 7
    %v2761 = vsub.s32 %v2758, %v2760
    %v2762 = vrot.slane %v2746, %v2761
    %v2764 = vunpack.c.l.s4 1983009808
    %v2765 = vunpack.c.0.s8 %v2764
    %v2766 = vlaneseq
    %v2767 = vshrl.u32 %v2766, 7
    %v2768 = vsub.s32 %v2765, %v2767
    %v2769 = vrot.slane %v2747, %v2768
    %v2771 = vunpack.c.l.s4 1983009808
    %v2772 = vunpack.c.0.s8 %v2771
    %v2773 = vlaneseq
    %v2774 = vshrl.u32 %v2773, 7
    %v2775 = vsub.s32 %v2772, %v2774
    %v2776 = vrot.slane %v2748, %v2775
    %v2777 = vcombine.low %v2755, %v2769
    %v2778 = vcombine.high %v2755, %v2769
    %v2779 = vcombine.low %v2762, %v2776
    %v2780 = vcombine.high %v2762, %v2776
    %v2789 = vadd.f32 %v2741, %v2742
    %v2790 = vadd.f32 %v2789, %v2743
    %v2791 = vadd.f32 %v2790, %v2744
    %v2792 = vadd.f32 %v2791, %v2777
    %v2793 = vadd.f32 %v2792, %v2778
    %v2794 = vadd.f32 %v2793, %v2779
    %v2795 = vadd.f32 %v2794, %v2780
    %2796 = vadd.xlane.f32.xlu0 %v2795
    %v2797 = vpop.xlane.xlu0 %2796
    %v2798 = vadd.f32 %v2568, %v2797
    %s2799 = sld [smem:[#allocation2]]
    %v2800 = vstv %s2799
    %v2801 = vadd.f32 %v2798, %v2800
    %v2802 = vsub.f32 0.0, %v2801
    %v2803 = vmul.f32 %v2802, 1.442695
    %v2804 = vpow.pop %v2803
    %v2805 = vadd.f32 %v2804, 1.0
    %v2806 = vrcp.pop %v2805
    %vm2807 = vcmask 7168
    %2808 = vst.msk [vmem:[#allocation7] sm:$0xff] %vm2807, %v2806
    // Predicated region
    $region22: #{tpu_custom_call.1} parent=1 // pred_check
      _
    $region23: #{tpu_custom_call.1} parent=1 // pred_check_branch
      %2810 = sbr.rel (0) target = $region25
    $region24: #{tpu_custom_call.1} parent=1 // pred_region
      // Predicated region
      $region26: #{tpu_custom_call.1} parent=24 // pred_check
        _
      $region27: #{tpu_custom_call.1} parent=24 // pred_check_branch
        %2812 = sbr.rel (0) target = $region29
      $region28: #{tpu_custom_call.1} parent=24 // pred_region
        // Predicated region
        $region30: #{tpu_custom_call.1} parent=28 // pred_check
          _
        $region31: #{tpu_custom_call.1} parent=28 // pred_check_branch
          %2814 = sbr.rel target = $region33
        $region32: #{tpu_custom_call.1} parent=28 // pred_region
          // Predicated region
          $region45: #{tpu_custom_call.1} parent=32 // pred_check
            _
          $region46: #{tpu_custom_call.1} parent=32 // pred_check_branch
            %2829 = sbr.rel (0) target = $region48
          $region47: #{tpu_custom_call.1} parent=32 // pred_region
            loop: start=0, step=1, limit=1
            $region49: #{tpu_custom_call.1} parent=47 // loop_pre_header
              _
            $region50: #{tpu_custom_call.1} parent=47 // loop_header
              %s2832 = sphi 0, %s2836
              %p2833 = scmp.ge.s32.totalorder %s2832, 1
              %s2837 = sphi [#allocation7], [#allocation7]
              %s2838 = sphi %s3, %s3
            $region51: #{tpu_custom_call.1} parent=47 // loop_header_branch
              %2835 = sbr.rel (%p2833) target = $region55
            $region52: #{tpu_custom_call.1} parent=47 // loop_body
              %v2839 = vld [vmem:[%s2837] sm:$0x3]
              %2840 = vst [vmem:[%s2838] sm:$0x3] %v2839
            $region53: #{tpu_custom_call.1} parent=47 // loop_footer
              %s2836 = sadd.s32 1, %s2832
            $region54: #{tpu_custom_call.1} parent=47 // loop_footer_branch
              %2831 = sbr.rel target = $region50
            $region55: #{tpu_custom_call.1} parent=47 // loop_exit
              _
          $region48: #{tpu_custom_call.1} parent=32 // pred_fallthru
            _
        $region33: #{tpu_custom_call.1} parent=28 // pred_fallthru
          _
        // Predicated region
        $region34: #{tpu_custom_call.1} parent=28 // pred_check
          _
        $region35: #{tpu_custom_call.1} parent=28 // pred_check_branch
          %2816 = sbr.rel (0) target = $region37
        $region36: #{tpu_custom_call.1} parent=28 // pred_region
          loop: start=0, step=1, limit=1
          $region38: #{tpu_custom_call.1} parent=36 // loop_pre_header
            _
          $region39: #{tpu_custom_call.1} parent=36 // loop_header
            %s2819 = sphi 0, %s2823
            %p2820 = scmp.ge.s32.totalorder %s2819, 1
            %s2824 = sphi [#allocation7], [#allocation7]
            %s2825 = sphi %s3, %s3
          $region40: #{tpu_custom_call.1} parent=36 // loop_header_branch
            %2822 = sbr.rel (%p2820) target = $region44
          $region41: #{tpu_custom_call.1} parent=36 // loop_body
            %v2826 = vld [vmem:[%s2824] sm:$0x3]
            %2827 = vst [vmem:[%s2825] sm:$0x3] %v2826
          $region42: #{tpu_custom_call.1} parent=36 // loop_footer
            %s2823 = sadd.s32 1, %s2819
          $region43: #{tpu_custom_call.1} parent=36 // loop_footer_branch
            %2818 = sbr.rel target = $region39
          $region44: #{tpu_custom_call.1} parent=36 // loop_exit
            _
        $region37: #{tpu_custom_call.1} parent=28 // pred_fallthru
          _
      $region29: #{tpu_custom_call.1} parent=24 // pred_fallthru
        _
      %2841 = vnop
    $region25: #{tpu_custom_call.1} parent=1 // pred_fallthru
      _
    // Predicated region
    $region56: #{tpu_custom_call.1} parent=1 // pred_check
      _
    $region57: #{tpu_custom_call.1} parent=1 // pred_check_branch
      %2843 = sbr.rel (0) target = $region59
    $region58: #{tpu_custom_call.1} parent=1 // pred_region
      _
    $region59: #{tpu_custom_call.1} parent=1 // pred_fallthru
      _
    %2844 = vsyncpa [#allocation4], 1
    %2845 = vsyncpa [#allocation6], 1

</llo_original>
